<compile_context>
chip_gen: v7x
topology: tpu7x:2x2x1
jax: 0.10.0
libtpu: 0.0.40
codegen_flags: <defaults>
</compile_context>

<pallas_src>
import functools

import jax
import jax.numpy as jnp
from jax.experimental import pallas as pl
from jax.experimental.pallas import tpu as pltpu

MOMENTUM = 0.99

_HAS_BUFFERED = hasattr(pl, "Buffered")


def _round_up(v, m):
    return (v + m - 1) // m * m


def _default_tm():
    """Row tile: 128 on v5e and older, 256 on v6e/v7x (MXU M width)."""
    try:
        kind = jax.devices()[0].device_kind.lower()
    except Exception:
        return 128
    return 128 if any(t in kind for t in ("v2", "v3", "v4", "v5")) else 256


def _vmem_capacity_bytes():
    try:
        cap = getattr(pltpu.get_tpu_info(), "vmem_capacity_bytes", None)
        if cap:
            return int(cap)
    except Exception:
        pass
    return 64 << 20  # safe fallback: legal on every generation (v7x: 64 MiB/TC)


def _row_tile(rows):
    """Largest row tile <= 512 that divides `rows` (rows are multiples of 128
    after padding, or the full row count for tiny arrays)."""
    if rows <= 512:
        return rows
    for t in (512, 384, 256, 128):
        if rows % t == 0:
            return t
    return rows


def _const_spec(shape, single_buffer=True):
    """BlockSpec for a grid-invariant (weight/bias) operand.

    Constant block index -> fetched once; Buffered(1) drops the useless second
    VMEM copy that default double-buffering would allocate."""
    idx = lambda i: (0,) * len(shape)
    if single_buffer and _HAS_BUFFERED:
        try:
            return pl.BlockSpec(shape, idx, pipeline_mode=pl.Buffered(1))
        except TypeError:  # older BlockSpec without pipeline_mode kwarg
            pass
    return pl.BlockSpec(shape, idx)


# ----------------------------------------------------------------------------
# EMA (+ compute-dtype cast) pre-passes.  Run ONCE per step, row-tiled so they
# are pure HBM-BW bound and never need a full weight set resident in VMEM.
# ----------------------------------------------------------------------------
def _ema_cat_kernel(pm_ref, p_ref, pm_out, cat_out, *, momentum, dout):
    m = jnp.float32(momentum)
    om = jnp.float32(1.0 - momentum)
    p = p_ref[...]
    pm_new = m * pm_ref[...] + om * p
    pm_out[...] = pm_new
    # Concatenated compute-dtype copy [W_online | W_momentum_new]: lets the
    # forward kernel do a single wide x @ W_cat for both encoder branches.
    cat_out[:, :dout] = p.astype(cat_out.dtype)
    cat_out[:, dout:] = pm_new.astype(cat_out.dtype)


def _ema_cast_kernel(pm_ref, p_ref, pm_out, pm_cd_out, p_cd_out, *, momentum):
    m = jnp.float32(momentum)
    om = jnp.float32(1.0 - momentum)
    p = p_ref[...]
    pm_new = m * pm_ref[...] + om * p
    pm_out[...] = pm_new
    pm_cd_out[...] = pm_new.astype(pm_cd_out.dtype)
    p_cd_out[...] = p.astype(p_cd_out.dtype)


def _ema_bias_kernel(b1m_ref, b2m_ref, b1_ref, b2_ref, b1m_out, b2m_out, *,
                     momentum):
    m = jnp.float32(momentum)
    om = jnp.float32(1.0 - momentum)
    b1m_out[...] = m * b1m_ref[...] + om * b1_ref[...]
    b2m_out[...] = m * b2m_ref[...] + om * b2_ref[...]


def _ema_cat(pm, p, momentum, cd):
    rows, cols = pm.shape
    rt = _row_tile(rows)
    spec = lambda c: pl.BlockSpec((rt, c), lambda i: (i, 0))
    return pl.pallas_call(
        functools.partial(_ema_cat_kernel, momentum=momentum, dout=cols),
        out_shape=(jax.ShapeDtypeStruct((rows, cols), jnp.float32),
                   jax.ShapeDtypeStruct((rows, 2 * cols), cd)),
        grid_spec=pltpu.PrefetchScalarGridSpec(
            num_scalar_prefetch=0, grid=(rows // rt,),
            in_specs=[spec(cols), spec(cols)],
            out_specs=[spec(cols), spec(2 * cols)]),
        compiler_params=pltpu.CompilerParams(
            dimension_semantics=("parallel",)),
    )(pm, p)


def _ema_cast(pm, p, momentum, cd):
    rows, cols = pm.shape
    rt = _row_tile(rows)
    spec = pl.BlockSpec((rt, cols), lambda i: (i, 0))
    return pl.pallas_call(
        functools.partial(_ema_cast_kernel, momentum=momentum),
        out_shape=(jax.ShapeDtypeStruct((rows, cols), jnp.float32),
                   jax.ShapeDtypeStruct((rows, cols), cd),
                   jax.ShapeDtypeStruct((rows, cols), cd)),
        grid_spec=pltpu.PrefetchScalarGridSpec(
            num_scalar_prefetch=0, grid=(rows // rt,),
            in_specs=[spec, spec],
            out_specs=[spec, spec, spec]),
        compiler_params=pltpu.CompilerParams(
            dimension_semantics=("parallel",)),
    )(pm, p)


def _ema_biases(b1m, b2m, b1, b2, momentum):
    full = lambda a: pl.BlockSpec(a.shape, lambda i: (0, 0))
    return pl.pallas_call(
        functools.partial(_ema_bias_kernel, momentum=momentum),
        out_shape=(jax.ShapeDtypeStruct(b1m.shape, jnp.float32),
                   jax.ShapeDtypeStruct(b2m.shape, jnp.float32)),
        grid_spec=pltpu.PrefetchScalarGridSpec(
            num_scalar_prefetch=0, grid=(1,),
            in_specs=[full(b1m), full(b2m), full(b1), full(b2)],
            out_specs=[full(b1m), full(b2m)]),
    )(b1m, b2m, b1, b2)


# ----------------------------------------------------------------------------
# Fused online + momentum forward over a batch tile.  Weights arrive already
# EMA-updated and pre-cast to the MXU compute dtype; accumulation / bias /
# ReLU stay f32 (v5e VPU has no bf16).
# ----------------------------------------------------------------------------
def _s3cl_kernel(x_ref, wecat_ref, w1_ref, b1_ref, w2_ref, b2_ref,
                 w1m_ref, b1m_ref, w2m_ref, b2m_ref,
                 h_ref, hp_ref, hpm_ref, *, dout):
    x = x_ref[...]            # (tm, Din) in compute dtype (bf16 by default)
    cd = x.dtype

    # Encoder for BOTH branches in one wide MXU pass: relu(x @ [W | W_m]).
    hcat = jnp.maximum(
        jnp.dot(x, wecat_ref[...], preferred_element_type=jnp.float32), 0.0)
    h = hcat[:, :dout]
    hm = hcat[:, dout:]

    # Online projector: relu(h @ W1 + b1) @ W2 + b2
    z1 = jnp.maximum(
        jnp.dot(h.astype(cd), w1_ref[...],
                preferred_element_type=jnp.float32) + b1_ref[...], 0.0)
    hp = jnp.dot(z1.astype(cd), w2_ref[...],
                 preferred_element_type=jnp.float32) + b2_ref[...]

    # Store the online outputs BEFORE building the momentum branch: halves
    # peak live f32 temporaries and lets the h/hp writeback DMA start early.
    h_ref[...] = h.astype(h_ref.dtype)
    hp_ref[...] = hp.astype(hp_ref.dtype)

    # Momentum projector (weights already EMA-updated by the pre-pass).
    z1m = jnp.maximum(
        jnp.dot(hm.astype(cd), w1m_ref[...],
                preferred_element_type=jnp.float32) + b1m_ref[...], 0.0)
    hpm = jnp.dot(z1m.astype(cd), w2m_ref[...],
                  preferred_element_type=jnp.float32) + b2m_ref[...]
    hpm_ref[...] = hpm.astype(hpm_ref.dtype)


# ----------------------------------------------------------------------------
# Wrapper
# ----------------------------------------------------------------------------
@functools.partial(
    jax.jit, static_argnames=("momentum", "tm", "compute_dtype", "out_dtype"))
def s3cl_forward(x, params, *, momentum=MOMENTUM, tm=None,
                 compute_dtype=jnp.bfloat16, out_dtype=jnp.float32):
    """Returns ((h, h_p, h_p_momt), updated_momentum_params)."""
    N, in_dim = x.shape
    out_dim = params["w_enc"].shape[1]
    hidden_dim = params["w1"].shape[0]
    # The reference module feeds encoder output (out_dim) into MLP(in_dim, ...).
    assert in_dim == out_dim, "S3CL_Model requires out_dim == in_dim"

    # Row tile: MXU-friendly default, clamped so the batch grid has >= 2 tiles
    # whenever the batch allows it (keeps both v7x TensorCores busy).
    if tm is None:
        tm = _default_tm()
        n128 = _round_up(N, 128)
        if n128 >= 2 * 128:
            tm = min(tm, _round_up(n128 // 2, 128))
        else:
            tm = 128

    # Lane-dense padding: feature dims -> multiples of 128 (unmasked vst, full
    # MXU tiles), batch -> multiple of tm.  Zero padding is exact for
    # matmul / bias / relu / EMA.
    Din = _round_up(in_dim, 128)
    Dout = _round_up(out_dim, 128)
    Dh = _round_up(hidden_dim, 128)
    Np = _round_up(N, tm)

    def pad2(a, r, c):
        return jnp.pad(a, ((0, r - a.shape[0]), (0, c - a.shape[1])))

    # TODO(synk): keep params pre-padded / pre-transposed across training steps
    # (feeding the padded momentum outputs straight back in) to remove this
    # per-call layout pass over every weight matrix.
    x_p = pad2(x, Np, Din)
    w_enc = pad2(params["w_enc"], Din, Dout)
    w1 = pad2(params["w1"].T, Dout, Dh)       # nn.Linear weights pre-transposed
    b1 = pad2(params["b1"].reshape(1, -1), 1, Dh)
    w2 = pad2(params["w2"].T, Dh, Dout)
    b2 = pad2(params["b2"].reshape(1, -1), 1, Dout)
    w_enc_m = pad2(params["w_enc_m"], Din, Dout)
    w1m = pad2(params["w1_m"].T, Dout, Dh)
    b1m = pad2(params["b1_m"].reshape(1, -1), 1, Dh)
    w2m = pad2(params["w2_m"].T, Dh, Dout)
    b2m = pad2(params["b2_m"].reshape(1, -1), 1, Dout)

    cd = jnp.dtype(compute_dtype)

    # ---- momentum EMA + cast pre-pass: runs ONCE, fused with the bf16 cast --
    w_enc_m_new, wecat_c = _ema_cat(w_enc_m, w_enc, momentum, cd)
    w1m_new, w1m_c, w1_c = _ema_cast(w1m, w1, momentum, cd)
    w2m_new, w2m_c, w2_c = _ema_cast(w2m, w2, momentum, cd)
    b1m_new, b2m_new = _ema_biases(b1m, b2m, b1, b2, momentum)

    x_c = x_p.astype(cd)

    # ---- fused forward over batch tiles -------------------------------------
    row_in = pl.BlockSpec((tm, Din), lambda i: (i, 0))
    row_out = pl.BlockSpec((tm, Dout), lambda i: (i, 0))

    # VMEM budget: single-buffered weights (Buffered(1)), double-buffered x and
    # outputs, f32 temporaries; capped at ~85% of this chip's VMEM capacity.
    # TODO(synk): add a weight-tiled (reduction-grid + VMEM accumulator)
    # fallback for dims where two compute-dtype weight sets exceed VMEM (v7x).
    ob = jnp.dtype(out_dtype).itemsize
    wbytes = ((Din * 2 * Dout + 2 * (Dout * Dh + Dh * Dout)) * cd.itemsize
              + 2 * (Dh + Dout) * 4)
    iobytes = 2 * tm * Din * cd.itemsize + 2 * 3 * tm * Dout * ob
    temps = tm * (2 * Dout + Dh + Dout) * 4
    cap = _vmem_capacity_bytes()
    vmem_limit = int(min(max(2 * (wbytes + iobytes + temps), 32 << 20),
                         int(cap * 0.85)))

    out_shapes = tuple(
        jax.ShapeDtypeStruct((Np, Dout), jnp.dtype(out_dtype))
        for _ in range(3))

    fwd = pl.pallas_call(
        functools.partial(_s3cl_kernel, dout=Dout),
        out_shape=out_shapes,
        grid_spec=pltpu.PrefetchScalarGridSpec(
            num_scalar_prefetch=0,
            grid=(Np // tm,),
            in_specs=[
                row_in,
                _const_spec(wecat_c.shape),
                _const_spec(w1_c.shape), _const_spec(b1.shape),
                _const_spec(w2_c.shape), _const_spec(b2.shape),
                _const_spec(w1m_c.shape), _const_spec(b1m_new.shape),
                _const_spec(w2m_c.shape), _const_spec(b2m_new.shape),
            ],
            out_specs=[row_out, row_out, row_out]),
        compiler_params=pltpu.CompilerParams(
            dimension_semantics=("parallel",),
            vmem_limit_bytes=vmem_limit),
    )
    h_pad, hp_pad, hpm_pad = fwd(x_c, wecat_c, w1_c, b1, w2_c, b2,
                                 w1m_c, b1m_new, w2m_c, b2m_new)

    h = h_pad[:N, :out_dim]
    hp = hp_pad[:N, :out_dim]
    hpm = hpm_pad[:N, :out_dim]

    # Updated momentum buffers in PyTorch layout (the module mutates these).
    new_momentum = {
        "w_enc_m": w_enc_m_new[:in_dim, :out_dim],
        "w1_m": w1m_new[:in_dim, :hidden_dim].T,
        "b1_m": b1m_new[0, :hidden_dim],
        "w2_m": w2m_new[:hidden_dim, :out_dim].T,
        "b2_m": b2m_new[0, :out_dim],
    }
    return (h, hp, hpm), new_momentum


# ----------------------------------------------------------------------------
# Pure-JAX reference matching the PyTorch forward.
# ----------------------------------------------------------------------------
def s3cl_reference(x, params, momentum=MOMENTUM):
    relu = lambda v: jnp.maximum(v, 0.0)
    h = relu(x @ params["w_enc"])
    hp = relu(h @ params["w1"].T + params["b1"]) @ params["w2"].T + params["b2"]
    lerp = lambda pm, p: momentum * pm + (1.0 - momentum) * p
    new_m = {
        "w_enc_m": lerp(params["w_enc_m"], params["w_enc"]),
        "w1_m": lerp(params["w1_m"], params["w1"]),
        "b1_m": lerp(params["b1_m"], params["b1"]),
        "w2_m": lerp(params["w2_m"], params["w2"]),
        "b2_m": lerp(params["b2_m"], params["b2"]),
    }
    hm = relu(x @ new_m["w_enc_m"])
    hpm = (relu(hm @ new_m["w1_m"].T + new_m["b1_m"]) @ new_m["w2_m"].T
           + new_m["b2_m"])
    return (h, hp, hpm), new_m


def init_params(key, in_dim, out_dim, hidden_dim):
    """Deterministic synthetic init (PyTorch parameter shapes)."""
    ks = jax.random.split(key, 10)
    xav = lambda k, fi, fo: jax.random.uniform(
        k, (fi, fo), jnp.float32, -1.0, 1.0) * jnp.sqrt(6.0 / (fi + fo))
    lin_w = lambda k, fo, fi: jax.random.uniform(
        k, (fo, fi), jnp.float32, -1.0, 1.0) / jnp.sqrt(fi)
    lin_b = lambda k, fo, fi: jax.random.uniform(
        k, (fo,), jnp.float32, -1.0, 1.0) / jnp.sqrt(fi)
    return {
        "w_enc":   xav(ks[0], in_dim, out_dim),
        "w_enc_m": xav(ks[1], in_dim, out_dim),
        "w1":   lin_w(ks[2], hidden_dim, in_dim),   # projector.fc_1.weight
        "b1":   lin_b(ks[3], hidden_dim, in_dim),
        "w2":   lin_w(ks[4], out_dim, hidden_dim),  # projector.fc_2.weight
        "b2":   lin_b(ks[5], out_dim, hidden_dim),
        "w1_m": lin_w(ks[6], hidden_dim, in_dim),
        "b1_m": lin_b(ks[7], hidden_dim, in_dim),
        "w2_m": lin_w(ks[8], out_dim, hidden_dim),
        "b2_m": lin_b(ks[9], out_dim, hidden_dim),
    }


if __name__ == "__main__":
    key = jax.random.PRNGKey(0)
    N, IN_DIM, OUT_DIM, HIDDEN = 16, 32, 32, 32   # out_dim == in_dim required

    k_x, k_p = jax.random.split(key)
    x = jax.random.normal(k_x, (N, IN_DIM), jnp.float32)
    params = init_params(k_p, IN_DIM, OUT_DIM, HIDDEN)

    (h_r, hp_r, hpm_r), new_m_r = s3cl_reference(x, params)

    # Perf-default path: bf16 MXU operands, f32 accumulation, auto row tile.
    (h, hp, hpm), new_m = s3cl_forward(x, params)
    jax.block_until_ready((h, hp, hpm, new_m))

    assert jnp.allclose(h, h_r, atol=5e-2, rtol=5e-2)
    assert jnp.allclose(hp, hp_r, atol=5e-2, rtol=5e-2)
    assert jnp.allclose(hpm, hpm_r, atol=5e-2, rtol=5e-2)
    for k in new_m_r:
        assert new_m[k].shape == new_m_r[k].shape, k
        assert jnp.allclose(new_m[k], new_m_r[k], atol=1e-6, rtol=1e-6), k

    # Full-f32 path for a tight numerical check of the fused pipeline.
    (h32, hp32, hpm32), _ = s3cl_forward(
        x, params, compute_dtype=jnp.float32, tm=128)
    jax.block_until_ready((h32, hp32, hpm32))
    assert jnp.allclose(h32, h_r, atol=1e-4, rtol=1e-4)
    assert jnp.allclose(hp32, hp_r, atol=1e-4, rtol=1e-4)
    assert jnp.allclose(hpm32, hpm_r, atol=1e-4, rtol=1e-4)

    print("KERNEL_OK")
</pallas_src>

<mosaic_0001>
module attributes {stable_mosaic.version = 11 : i64} {
  func.func @_ema_bias_kernel(%arg0: i32, %arg1: memref<1x128xf32, #tpu.memory_space<vmem>>, %arg2: memref<1x128xf32, #tpu.memory_space<vmem>>, %arg3: memref<1x128xf32, #tpu.memory_space<vmem>>, %arg4: memref<1x128xf32, #tpu.memory_space<vmem>>, %arg5: memref<1x128xf32, #tpu.memory_space<vmem>>, %arg6: memref<1x128xf32, #tpu.memory_space<vmem>>) attributes {dimension_semantics = [#tpu.dimension_semantics<arbitrary>], iteration_bounds = array<i64: 1>, scalar_prefetch = 0 : i64, scratch_operands = 0 : i64, tpu.core_type = #tpu.core_type<tc>, window_params = [{pipeline_mode = #tpu.pipeline_mode<synchronous>, transform_indices = @transform_0, window_bounds = array<i64: 1, 128>}, {pipeline_mode = #tpu.pipeline_mode<synchronous>, transform_indices = @transform_1, window_bounds = array<i64: 1, 128>}, {pipeline_mode = #tpu.pipeline_mode<synchronous>, transform_indices = @transform_2, window_bounds = array<i64: 1, 128>}, {pipeline_mode = #tpu.pipeline_mode<synchronous>, transform_indices = @transform_3, window_bounds = array<i64: 1, 128>}, {pipeline_mode = #tpu.pipeline_mode<synchronous>, transform_indices = @transform_4, window_bounds = array<i64: 1, 128>}, {pipeline_mode = #tpu.pipeline_mode<synchronous>, transform_indices = @transform_5, window_bounds = array<i64: 1, 128>}]} {
    %c0 = arith.constant 0 : index
    %c0_0 = arith.constant 0 : index
    %0 = vector.load %arg1[%c0, %c0_0] : memref<1x128xf32, #tpu.memory_space<vmem>>, vector<1x128xf32>
    %cst = arith.constant 9.900000e-01 : f32
    %1 = vector.broadcast %cst : f32 to vector<1x128xf32>
    %2 = arith.mulf %1, %0 : vector<1x128xf32>
    %c0_1 = arith.constant 0 : index
    %c0_2 = arith.constant 0 : index
    %3 = vector.load %arg3[%c0_1, %c0_2] : memref<1x128xf32, #tpu.memory_space<vmem>>, vector<1x128xf32>
    %cst_3 = arith.constant 0.00999999977 : f32
    %4 = vector.broadcast %cst_3 : f32 to vector<1x128xf32>
    %5 = arith.mulf %4, %3 : vector<1x128xf32>
    %6 = arith.addf %2, %5 : vector<1x128xf32>
    %c0_4 = arith.constant 0 : index
    %c0_5 = arith.constant 0 : index
    %7 = vector.load %arg5[%c0_4, %c0_5] : memref<1x128xf32, #tpu.memory_space<vmem>>, vector<1x128xf32>
    tpu.vector_store %arg5[%c0_4, %c0_5], %6 {strides = array<i32>} : memref<1x128xf32, #tpu.memory_space<vmem>>, vector<1x128xf32>,
    %c0_6 = arith.constant 0 : index
    %c0_7 = arith.constant 0 : index
    %8 = vector.load %arg2[%c0_6, %c0_7] : memref<1x128xf32, #tpu.memory_space<vmem>>, vector<1x128xf32>
    %cst_8 = arith.constant 9.900000e-01 : f32
    %9 = vector.broadcast %cst_8 : f32 to vector<1x128xf32>
    %10 = arith.mulf %9, %8 : vector<1x128xf32>
    %c0_9 = arith.constant 0 : index
    %c0_10 = arith.constant 0 : index
    %11 = vector.load %arg4[%c0_9, %c0_10] : memref<1x128xf32, #tpu.memory_space<vmem>>, vector<1x128xf32>
    %cst_11 = arith.constant 0.00999999977 : f32
    %12 = vector.broadcast %cst_11 : f32 to vector<1x128xf32>
    %13 = arith.mulf %12, %11 : vector<1x128xf32>
    %14 = arith.addf %10, %13 : vector<1x128xf32>
    %c0_12 = arith.constant 0 : index
    %c0_13 = arith.constant 0 : index
    %15 = vector.load %arg6[%c0_12, %c0_13] : memref<1x128xf32, #tpu.memory_space<vmem>>, vector<1x128xf32>
    tpu.vector_store %arg6[%c0_12, %c0_13], %14 {strides = array<i32>} : memref<1x128xf32, #tpu.memory_space<vmem>>, vector<1x128xf32>,
    return
  }
  func.func @transform_0(%arg0: i32) -> (i32, i32) {
    %c0_i32 = arith.constant 0 : i32
    %c0_i32_0 = arith.constant 0 : i32
    %c0_i32_1 = arith.constant 0 : i32
    return %c0_i32, %c0_i32_0 : i32, i32
  }
  func.func @transform_1(%arg0: i32) -> (i32, i32) {
    %c0_i32 = arith.constant 0 : i32
    %c0_i32_0 = arith.constant 0 : i32
    %c0_i32_1 = arith.constant 0 : i32
    return %c0_i32, %c0_i32_0 : i32, i32
  }
  func.func @transform_2(%arg0: i32) -> (i32, i32) {
    %c0_i32 = arith.constant 0 : i32
    %c0_i32_0 = arith.constant 0 : i32
    %c0_i32_1 = arith.constant 0 : i32
    return %c0_i32, %c0_i32_0 : i32, i32
  }
  func.func @transform_3(%arg0: i32) -> (i32, i32) {
    %c0_i32 = arith.constant 0 : i32
    %c0_i32_0 = arith.constant 0 : i32
    %c0_i32_1 = arith.constant 0 : i32
    return %c0_i32, %c0_i32_0 : i32, i32
  }
  func.func @transform_4(%arg0: i32) -> (i32, i32) {
    %c0_i32 = arith.constant 0 : i32
    %c0_i32_0 = arith.constant 0 : i32
    %c0_i32_1 = arith.constant 0 : i32
    return %c0_i32, %c0_i32_0 : i32, i32
  }
  func.func @transform_5(%arg0: i32) -> (i32, i32) {
    %c0_i32 = arith.constant 0 : i32
    %c0_i32_0 = arith.constant 0 : i32
    %c0_i32_1 = arith.constant 0 : i32
    return %c0_i32, %c0_i32_0 : i32, i32
  }
}

module attributes {stable_mosaic.version = 11 : i64} {
  func.func @_ema_cast_kernel(%arg0: i32, %arg1: memref<128x128xf32, #tpu.memory_space<vmem>>, %arg2: memref<128x128xf32, #tpu.memory_space<vmem>>, %arg3: memref<128x128xf32, #tpu.memory_space<vmem>>, %arg4: memref<128x128xbf16, #tpu.memory_space<vmem>>, %arg5: memref<128x128xbf16, #tpu.memory_space<vmem>>) attributes {dimension_semantics = [#tpu.dimension_semantics<parallel>], iteration_bounds = array<i64: 1>, scalar_prefetch = 0 : i64, scratch_operands = 0 : i64, tpu.core_type = #tpu.core_type<tc>, window_params = [{transform_indices = @transform_0, window_bounds = array<i64: 128, 128>}, {transform_indices = @transform_1, window_bounds = array<i64: 128, 128>}, {transform_indices = @transform_2, window_bounds = array<i64: 128, 128>}, {transform_indices = @transform_3, window_bounds = array<i64: 128, 128>}, {transform_indices = @transform_4, window_bounds = array<i64: 128, 128>}]} {
    %c0 = arith.constant 0 : index
    %c0_0 = arith.constant 0 : index
    %0 = vector.load %arg2[%c0, %c0_0] : memref<128x128xf32, #tpu.memory_space<vmem>>, vector<128x128xf32>
    %c0_1 = arith.constant 0 : index
    %c0_2 = arith.constant 0 : index
    %1 = vector.load %arg1[%c0_1, %c0_2] : memref<128x128xf32, #tpu.memory_space<vmem>>, vector<128x128xf32>
    %cst = arith.constant 9.900000e-01 : f32
    %2 = vector.broadcast %cst : f32 to vector<128x128xf32>
    %3 = arith.mulf %2, %1 : vector<128x128xf32>
    %cst_3 = arith.constant 0.00999999977 : f32
    %4 = vector.broadcast %cst_3 : f32 to vector<128x128xf32>
    %5 = arith.mulf %4, %0 : vector<128x128xf32>
    %6 = arith.addf %3, %5 : vector<128x128xf32>
    %c0_4 = arith.constant 0 : index
    %c0_5 = arith.constant 0 : index
    %7 = vector.load %arg3[%c0_4, %c0_5] : memref<128x128xf32, #tpu.memory_space<vmem>>, vector<128x128xf32>
    tpu.vector_store %arg3[%c0_4, %c0_5], %6 {strides = array<i32>} : memref<128x128xf32, #tpu.memory_space<vmem>>, vector<128x128xf32>,
    %8 = arith.truncf %6 : vector<128x128xf32> to vector<128x128xbf16>
    %c0_6 = arith.constant 0 : index
    %c0_7 = arith.constant 0 : index
    %9 = vector.load %arg4[%c0_6, %c0_7] : memref<128x128xbf16, #tpu.memory_space<vmem>>, vector<128x128xbf16>
    tpu.vector_store %arg4[%c0_6, %c0_7], %8 {strides = array<i32>} : memref<128x128xbf16, #tpu.memory_space<vmem>>, vector<128x128xbf16>,
    %10 = arith.truncf %0 : vector<128x128xf32> to vector<128x128xbf16>
    %c0_8 = arith.constant 0 : index
    %c0_9 = arith.constant 0 : index
    %11 = vector.load %arg5[%c0_8, %c0_9] : memref<128x128xbf16, #tpu.memory_space<vmem>>, vector<128x128xbf16>
    tpu.vector_store %arg5[%c0_8, %c0_9], %10 {strides = array<i32>} : memref<128x128xbf16, #tpu.memory_space<vmem>>, vector<128x128xbf16>,
    return
  }
  func.func @transform_0(%arg0: i32) -> (i32, i32) {
    %c0_i32 = arith.constant 0 : i32
    %c0_i32_0 = arith.constant 0 : i32
    return %arg0, %c0_i32 : i32, i32
  }
  func.func @transform_1(%arg0: i32) -> (i32, i32) {
    %c0_i32 = arith.constant 0 : i32
    %c0_i32_0 = arith.constant 0 : i32
    return %arg0, %c0_i32 : i32, i32
  }
  func.func @transform_2(%arg0: i32) -> (i32, i32) {
    %c0_i32 = arith.constant 0 : i32
    %c0_i32_0 = arith.constant 0 : i32
    return %arg0, %c0_i32 : i32, i32
  }
  func.func @transform_3(%arg0: i32) -> (i32, i32) {
    %c0_i32 = arith.constant 0 : i32
    %c0_i32_0 = arith.constant 0 : i32
    return %arg0, %c0_i32 : i32, i32
  }
  func.func @transform_4(%arg0: i32) -> (i32, i32) {
    %c0_i32 = arith.constant 0 : i32
    %c0_i32_0 = arith.constant 0 : i32
    return %arg0, %c0_i32 : i32, i32
  }
}

module attributes {stable_mosaic.version = 11 : i64} {
  func.func @_ema_cat_kernel(%arg0: i32, %arg1: memref<128x128xf32, #tpu.memory_space<vmem>>, %arg2: memref<128x128xf32, #tpu.memory_space<vmem>>, %arg3: memref<128x128xf32, #tpu.memory_space<vmem>>, %arg4: memref<128x256xbf16, #tpu.memory_space<vmem>>) attributes {dimension_semantics = [#tpu.dimension_semantics<parallel>], iteration_bounds = array<i64: 1>, scalar_prefetch = 0 : i64, scratch_operands = 0 : i64, tpu.core_type = #tpu.core_type<tc>, window_params = [{transform_indices = @transform_0, window_bounds = array<i64: 128, 128>}, {transform_indices = @transform_1, window_bounds = array<i64: 128, 128>}, {transform_indices = @transform_2, window_bounds = array<i64: 128, 128>}, {transform_indices = @transform_3, window_bounds = array<i64: 128, 256>}]} {
    %c0 = arith.constant 0 : index
    %c0_0 = arith.constant 0 : index
    %0 = vector.load %arg2[%c0, %c0_0] : memref<128x128xf32, #tpu.memory_space<vmem>>, vector<128x128xf32>
    %c0_1 = arith.constant 0 : index
    %c0_2 = arith.constant 0 : index
    %1 = vector.load %arg1[%c0_1, %c0_2] : memref<128x128xf32, #tpu.memory_space<vmem>>, vector<128x128xf32>
    %cst = arith.constant 9.900000e-01 : f32
    %2 = vector.broadcast %cst : f32 to vector<128x128xf32>
    %3 = arith.mulf %2, %1 : vector<128x128xf32>
    %cst_3 = arith.constant 0.00999999977 : f32
    %4 = vector.broadcast %cst_3 : f32 to vector<128x128xf32>
    %5 = arith.mulf %4, %0 : vector<128x128xf32>
    %6 = arith.addf %3, %5 : vector<128x128xf32>
    %c0_4 = arith.constant 0 : index
    %c0_5 = arith.constant 0 : index
    %7 = vector.load %arg3[%c0_4, %c0_5] : memref<128x128xf32, #tpu.memory_space<vmem>>, vector<128x128xf32>
    tpu.vector_store %arg3[%c0_4, %c0_5], %6 {strides = array<i32>} : memref<128x128xf32, #tpu.memory_space<vmem>>, vector<128x128xf32>,
    %8 = arith.truncf %0 : vector<128x128xf32> to vector<128x128xbf16>
    %c0_6 = arith.constant 0 : index
    %c0_7 = arith.constant 0 : index
    %9 = vector.load %arg4[%c0_6, %c0_7] : memref<128x256xbf16, #tpu.memory_space<vmem>>, vector<128x128xbf16>
    tpu.vector_store %arg4[%c0_6, %c0_7], %8 {strides = array<i32>} : memref<128x256xbf16, #tpu.memory_space<vmem>>, vector<128x128xbf16>,
    %10 = arith.truncf %6 : vector<128x128xf32> to vector<128x128xbf16>
    %c0_8 = arith.constant 0 : index
    %c128 = arith.constant 128 : index
    %11 = vector.load %arg4[%c0_8, %c128] : memref<128x256xbf16, #tpu.memory_space<vmem>>, vector<128x128xbf16>
    tpu.vector_store %arg4[%c0_8, %c128], %10 {strides = array<i32>} : memref<128x256xbf16, #tpu.memory_space<vmem>>, vector<128x128xbf16>,
    return
  }
  func.func @transform_0(%arg0: i32) -> (i32, i32) {
    %c0_i32 = arith.constant 0 : i32
    %c0_i32_0 = arith.constant 0 : i32
    return %arg0, %c0_i32 : i32, i32
  }
  func.func @transform_1(%arg0: i32) -> (i32, i32) {
    %c0_i32 = arith.constant 0 : i32
    %c0_i32_0 = arith.constant 0 : i32
    return %arg0, %c0_i32 : i32, i32
  }
  func.func @transform_2(%arg0: i32) -> (i32, i32) {
    %c0_i32 = arith.constant 0 : i32
    %c0_i32_0 = arith.constant 0 : i32
    return %arg0, %c0_i32 : i32, i32
  }
  func.func @transform_3(%arg0: i32) -> (i32, i32) {
    %c0_i32 = arith.constant 0 : i32
    %c0_i32_0 = arith.constant 0 : i32
    return %arg0, %c0_i32 : i32, i32
  }
}

module attributes {stable_mosaic.version = 11 : i64} {
  func.func @_s3cl_kernel(%arg0: i32, %arg1: memref<128x128xbf16, #tpu.memory_space<vmem>>, %arg2: memref<128x256xbf16, #tpu.memory_space<vmem>>, %arg3: memref<128x128xbf16, #tpu.memory_space<vmem>>, %arg4: memref<1x128xf32, #tpu.memory_space<vmem>>, %arg5: memref<128x128xbf16, #tpu.memory_space<vmem>>, %arg6: memref<1x128xf32, #tpu.memory_space<vmem>>, %arg7: memref<128x128xbf16, #tpu.memory_space<vmem>>, %arg8: memref<1x128xf32, #tpu.memory_space<vmem>>, %arg9: memref<128x128xbf16, #tpu.memory_space<vmem>>, %arg10: memref<1x128xf32, #tpu.memory_space<vmem>>, %arg11: memref<128x128xf32, #tpu.memory_space<vmem>>, %arg12: memref<128x128xf32, #tpu.memory_space<vmem>>, %arg13: memref<128x128xf32, #tpu.memory_space<vmem>>) attributes {dimension_semantics = [#tpu.dimension_semantics<parallel>], iteration_bounds = array<i64: 1>, scalar_prefetch = 0 : i64, scratch_operands = 0 : i64, tpu.core_type = #tpu.core_type<tc>, window_params = [{transform_indices = @transform_0, window_bounds = array<i64: 128, 128>}, {pipeline_mode = #tpu.pipeline_mode<synchronous>, transform_indices = @transform_1, window_bounds = array<i64: 128, 256>}, {pipeline_mode = #tpu.pipeline_mode<synchronous>, transform_indices = @transform_2, window_bounds = array<i64: 128, 128>}, {pipeline_mode = #tpu.pipeline_mode<synchronous>, transform_indices = @transform_3, window_bounds = array<i64: 1, 128>}, {pipeline_mode = #tpu.pipeline_mode<synchronous>, transform_indices = @transform_4, window_bounds = array<i64: 128, 128>}, {pipeline_mode = #tpu.pipeline_mode<synchronous>, transform_indices = @transform_5, window_bounds = array<i64: 1, 128>}, {pipeline_mode = #tpu.pipeline_mode<synchronous>, transform_indices = @transform_6, window_bounds = array<i64: 128, 128>}, {pipeline_mode = #tpu.pipeline_mode<synchronous>, transform_indices = @transform_7, window_bounds = array<i64: 1, 128>}, {pipeline_mode = #tpu.pipeline_mode<synchronous>, transform_indices = @transform_8, window_bounds = array<i64: 128, 128>}, {pipeline_mode = #tpu.pipeline_mode<synchronous>, transform_indices = @transform_9, window_bounds = array<i64: 1, 128>}, {transform_indices = @transform_10, window_bounds = array<i64: 128, 128>}, {transform_indices = @transform_11, window_bounds = array<i64: 128, 128>}, {transform_indices = @transform_12, window_bounds = array<i64: 128, 128>}]} {
    %c0 = arith.constant 0 : index
    %c0_0 = arith.constant 0 : index
    %0 = vector.load %arg1[%c0, %c0_0] : memref<128x128xbf16, #tpu.memory_space<vmem>>, vector<128x128xbf16>
    %c0_1 = arith.constant 0 : index
    %c0_2 = arith.constant 0 : index
    %1 = vector.load %arg2[%c0_1, %c0_2] : memref<128x256xbf16, #tpu.memory_space<vmem>>, vector<128x256xbf16>
    %cst = arith.constant dense<0.000000e+00> : vector<128x256xf32>
    %2 = tpu.matmul %0, %1, %cst {dimension_numbers = #tpu.dot_dimension_numbers<[1], [0], [0], [1], [0, 0, 1, 1], [], []>} : vector<128x128xbf16>, vector<128x256xbf16>, vector<128x256xf32> -> vector<128x256xf32>
    %cst_3 = arith.constant 0.000000e+00 : f32
    %3 = vector.broadcast %cst_3 : f32 to vector<128x256xf32>
    %4 = arith.maximumf %2, %3 : vector<128x256xf32>
    %5 = vector.extract_strided_slice %4 {offsets = [0, 0], sizes = [128, 128], strides = [1, 1]} : vector<128x256xf32> to vector<128x128xf32>
    %6 = vector.extract_strided_slice %4 {offsets = [0, 128], sizes = [128, 128], strides = [1, 1]} : vector<128x256xf32> to vector<128x128xf32>
    %7 = arith.truncf %5 : vector<128x128xf32> to vector<128x128xbf16>
    %c0_4 = arith.constant 0 : index
    %c0_5 = arith.constant 0 : index
    %8 = vector.load %arg3[%c0_4, %c0_5] : memref<128x128xbf16, #tpu.memory_space<vmem>>, vector<128x128xbf16>
    %cst_6 = arith.constant dense<0.000000e+00> : vector<128x128xf32>
    %9 = tpu.matmul %7, %8, %cst_6 {dimension_numbers = #tpu.dot_dimension_numbers<[1], [0], [0], [1], [0, 0, 1, 1], [], []>} : vector<128x128xbf16>, vector<128x128xbf16>, vector<128x128xf32> -> vector<128x128xf32>
    %c0_7 = arith.constant 0 : index
    %c0_8 = arith.constant 0 : index
    %10 = vector.load %arg4[%c0_7, %c0_8] : memref<1x128xf32, #tpu.memory_space<vmem>>, vector<1x128xf32>
    %11 = vector.broadcast %10 : vector<1x128xf32> to vector<128x128xf32>
    %12 = arith.addf %9, %11 : vector<128x128xf32>
    %cst_9 = arith.constant 0.000000e+00 : f32
    %13 = vector.broadcast %cst_9 : f32 to vector<128x128xf32>
    %14 = arith.maximumf %12, %13 : vector<128x128xf32>
    %15 = arith.truncf %14 : vector<128x128xf32> to vector<128x128xbf16>
    %c0_10 = arith.constant 0 : index
    %c0_11 = arith.constant 0 : index
    %16 = vector.load %arg5[%c0_10, %c0_11] : memref<128x128xbf16, #tpu.memory_space<vmem>>, vector<128x128xbf16>
    %cst_12 = arith.constant dense<0.000000e+00> : vector<128x128xf32>
    %17 = tpu.matmul %15, %16, %cst_12 {dimension_numbers = #tpu.dot_dimension_numbers<[1], [0], [0], [1], [0, 0, 1, 1], [], []>} : vector<128x128xbf16>, vector<128x128xbf16>, vector<128x128xf32> -> vector<128x128xf32>
    %c0_13 = arith.constant 0 : index
    %c0_14 = arith.constant 0 : index
    %18 = vector.load %arg6[%c0_13, %c0_14] : memref<1x128xf32, #tpu.memory_space<vmem>>, vector<1x128xf32>
    %19 = vector.broadcast %18 : vector<1x128xf32> to vector<128x128xf32>
    %20 = arith.addf %17, %19 : vector<128x128xf32>
    %c0_15 = arith.constant 0 : index
    %c0_16 = arith.constant 0 : index
    %21 = vector.load %arg11[%c0_15, %c0_16] : memref<128x128xf32, #tpu.memory_space<vmem>>, vector<128x128xf32>
    tpu.vector_store %arg11[%c0_15, %c0_16], %5 {strides = array<i32>} : memref<128x128xf32, #tpu.memory_space<vmem>>, vector<128x128xf32>,
    %c0_17 = arith.constant 0 : index
    %c0_18 = arith.constant 0 : index
    %22 = vector.load %arg12[%c0_17, %c0_18] : memref<128x128xf32, #tpu.memory_space<vmem>>, vector<128x128xf32>
    tpu.vector_store %arg12[%c0_17, %c0_18], %20 {strides = array<i32>} : memref<128x128xf32, #tpu.memory_space<vmem>>, vector<128x128xf32>,
    %23 = arith.truncf %6 : vector<128x128xf32> to vector<128x128xbf16>
    %c0_19 = arith.constant 0 : index
    %c0_20 = arith.constant 0 : index
    %24 = vector.load %arg7[%c0_19, %c0_20] : memref<128x128xbf16, #tpu.memory_space<vmem>>, vector<128x128xbf16>
    %cst_21 = arith.constant dense<0.000000e+00> : vector<128x128xf32>
    %25 = tpu.matmul %23, %24, %cst_21 {dimension_numbers = #tpu.dot_dimension_numbers<[1], [0], [0], [1], [0, 0, 1, 1], [], []>} : vector<128x128xbf16>, vector<128x128xbf16>, vector<128x128xf32> -> vector<128x128xf32>
    %c0_22 = arith.constant 0 : index
    %c0_23 = arith.constant 0 : index
    %26 = vector.load %arg8[%c0_22, %c0_23] : memref<1x128xf32, #tpu.memory_space<vmem>>, vector<1x128xf32>
    %27 = vector.broadcast %26 : vector<1x128xf32> to vector<128x128xf32>
    %28 = arith.addf %25, %27 : vector<128x128xf32>
    %cst_24 = arith.constant 0.000000e+00 : f32
    %29 = vector.broadcast %cst_24 : f32 to vector<128x128xf32>
    %30 = arith.maximumf %28, %29 : vector<128x128xf32>
    %31 = arith.truncf %30 : vector<128x128xf32> to vector<128x128xbf16>
    %c0_25 = arith.constant 0 : index
    %c0_26 = arith.constant 0 : index
    %32 = vector.load %arg9[%c0_25, %c0_26] : memref<128x128xbf16, #tpu.memory_space<vmem>>, vector<128x128xbf16>
    %cst_27 = arith.constant dense<0.000000e+00> : vector<128x128xf32>
    %33 = tpu.matmul %31, %32, %cst_27 {dimension_numbers = #tpu.dot_dimension_numbers<[1], [0], [0], [1], [0, 0, 1, 1], [], []>} : vector<128x128xbf16>, vector<128x128xbf16>, vector<128x128xf32> -> vector<128x128xf32>
    %c0_28 = arith.constant 0 : index
    %c0_29 = arith.constant 0 : index
    %34 = vector.load %arg10[%c0_28, %c0_29] : memref<1x128xf32, #tpu.memory_space<vmem>>, vector<1x128xf32>
    %35 = vector.broadcast %34 : vector<1x128xf32> to vector<128x128xf32>
    %36 = arith.addf %33, %35 : vector<128x128xf32>
    %c0_30 = arith.constant 0 : index
    %c0_31 = arith.constant 0 : index
    %37 = vector.load %arg13[%c0_30, %c0_31] : memref<128x128xf32, #tpu.memory_space<vmem>>, vector<128x128xf32>
    tpu.vector_store %arg13[%c0_30, %c0_31], %36 {strides = array<i32>} : memref<128x128xf32, #tpu.memory_space<vmem>>, vector<128x128xf32>,
    return
  }
  func.func @transform_0(%arg0: i32) -> (i32, i32) {
    %c0_i32 = arith.constant 0 : i32
    %c0_i32_0 = arith.constant 0 : i32
    return %arg0, %c0_i32 : i32, i32
  }
  func.func @transform_1(%arg0: i32) -> (i32, i32) {
    %c0_i32 = arith.constant 0 : i32
    %c0_i32_0 = arith.constant 0 : i32
    %c0_i32_1 = arith.constant 0 : i32
    return %c0_i32, %c0_i32_0 : i32, i32
  }
  func.func @transform_2(%arg0: i32) -> (i32, i32) {
    %c0_i32 = arith.constant 0 : i32
    %c0_i32_0 = arith.constant 0 : i32
    %c0_i32_1 = arith.constant 0 : i32
    return %c0_i32, %c0_i32_0 : i32, i32
  }
  func.func @transform_3(%arg0: i32) -> (i32, i32) {
    %c0_i32 = arith.constant 0 : i32
    %c0_i32_0 = arith.constant 0 : i32
    %c0_i32_1 = arith.constant 0 : i32
    return %c0_i32, %c0_i32_0 : i32, i32
  }
  func.func @transform_4(%arg0: i32) -> (i32, i32) {
    %c0_i32 = arith.constant 0 : i32
    %c0_i32_0 = arith.constant 0 : i32
    %c0_i32_1 = arith.constant 0 : i32
    return %c0_i32, %c0_i32_0 : i32, i32
  }
  func.func @transform_5(%arg0: i32) -> (i32, i32) {
    %c0_i32 = arith.constant 0 : i32
    %c0_i32_0 = arith.constant 0 : i32
    %c0_i32_1 = arith.constant 0 : i32
    return %c0_i32, %c0_i32_0 : i32, i32
  }
  func.func @transform_6(%arg0: i32) -> (i32, i32) {
    %c0_i32 = arith.constant 0 : i32
    %c0_i32_0 = arith.constant 0 : i32
    %c0_i32_1 = arith.constant 0 : i32
    return %c0_i32, %c0_i32_0 : i32, i32
  }
  func.func @transform_7(%arg0: i32) -> (i32, i32) {
    %c0_i32 = arith.constant 0 : i32
    %c0_i32_0 = arith.constant 0 : i32
    %c0_i32_1 = arith.constant 0 : i32
    return %c0_i32, %c0_i32_0 : i32, i32
  }
  func.func @transform_8(%arg0: i32) -> (i32, i32) {
    %c0_i32 = arith.constant 0 : i32
    %c0_i32_0 = arith.constant 0 : i32
    %c0_i32_1 = arith.constant 0 : i32
    return %c0_i32, %c0_i32_0 : i32, i32
  }
  func.func @transform_9(%arg0: i32) -> (i32, i32) {
    %c0_i32 = arith.constant 0 : i32
    %c0_i32_0 = arith.constant 0 : i32
    %c0_i32_1 = arith.constant 0 : i32
    return %c0_i32, %c0_i32_0 : i32, i32
  }
  func.func @transform_10(%arg0: i32) -> (i32, i32) {
    %c0_i32 = arith.constant 0 : i32
    %c0_i32_0 = arith.constant 0 : i32
    return %arg0, %c0_i32 : i32, i32
  }
  func.func @transform_11(%arg0: i32) -> (i32, i32) {
    %c0_i32 = arith.constant 0 : i32
    %c0_i32_0 = arith.constant 0 : i32
    return %arg0, %c0_i32 : i32, i32
  }
  func.func @transform_12(%arg0: i32) -> (i32, i32) {
    %c0_i32 = arith.constant 0 : i32
    %c0_i32_0 = arith.constant 0 : i32
    return %arg0, %c0_i32 : i32, i32
  }
}

</mosaic_0001>

<llo_original>
// kernel: s3cl_forward.8
$region0: #{s3cl_forward.8}
  #allocation0 [shape = 'u32[]', space=smem, size = 0x4, offset = 0x4, fixed_abs, tag = 'smem constant byte address 0x4 - core index']
  #allocation1 [shape = 'u32[144,128]{1,0:T(1,128)}', space=vmem, size = 0x12000, scoped, tag = 'internal scratch']
  %s0 = inlined_call_operand.vmem [shape: f32[1,128], index: 0, kind: input, shape index: {}]
  %s1 = inlined_call_operand.vmem [shape: f32[1,128], index: 1, kind: input, shape index: {}]
  %s2 = inlined_call_operand.vmem [shape: f32[1,128], index: 2, kind: input, shape index: {}]
  %s3 = inlined_call_operand.vmem [shape: f32[1,128], index: 3, kind: input, shape index: {}]
  %s4 = inlined_call_operand.vmem [shape: f32[1,128], index: 4, kind: output, shape index: {0}]
  %s5 = inlined_call_operand.vmem [shape: f32[1,128], index: 5, kind: output, shape index: {1}]
  %6 = xla_tuple %s4, %s5
  %s7 = sld [smem:[#allocation0]]
  $region34: #{s3cl_forward.8} parent=0
    _
  %s9 = ssub.s32 1, %s7
  %s10 = scalar_select 0, %s9, %s7
  // Predicated region
  $region2: #{s3cl_forward.8} parent=0 // pred_check
    _
  $region3: #{s3cl_forward.8} parent=0 // pred_check_branch
    %12 = sbr.rel (0) target = $region5
  $region4: #{s3cl_forward.8} parent=0 // pred_region
    _
  $region5: #{s3cl_forward.8} parent=0 // pred_fallthru
    _
  // Predicated region
  $region6: #{s3cl_forward.8} parent=0 // pred_check
    _
  $region7: #{s3cl_forward.8} parent=0 // pred_check_branch
    %14 = sbr.rel (0) target = $region9
  $region8: #{s3cl_forward.8} parent=0 // pred_region
    _
  $region9: #{s3cl_forward.8} parent=0 // pred_fallthru
    _
  // Predicated region
  $region10: #{s3cl_forward.8} parent=0 // pred_check
    _
  $region11: #{s3cl_forward.8} parent=0 // pred_check_branch
    %16 = sbr.rel (0) target = $region13
  $region12: #{s3cl_forward.8} parent=0 // pred_region
    _
  $region13: #{s3cl_forward.8} parent=0 // pred_fallthru
    _
  // Predicated region
  $region14: #{s3cl_forward.8} parent=0 // pred_check
    _
  $region15: #{s3cl_forward.8} parent=0 // pred_check_branch
    %18 = sbr.rel (0) target = $region17
  $region16: #{s3cl_forward.8} parent=0 // pred_region
    _
  $region17: #{s3cl_forward.8} parent=0 // pred_fallthru
    _
  %v19 = vld [vmem:[%s0] sm:$0x1]
  %v20 = vmul.f32 %v19, 0.99
  %v21 = vld [vmem:[%s2] sm:$0x1]
  %v22 = vmul.f32 %v21, 0.01
  %v23 = vadd.f32 %v20, %v22
  %24 = vst [vmem:[%s4] sm:$0x1] %v23
  %v25 = vld [vmem:[%s1] sm:$0x1]
  %v26 = vmul.f32 %v25, 0.99
  %v27 = vld [vmem:[%s3] sm:$0x1]
  %v28 = vmul.f32 %v27, 0.01
  %v29 = vadd.f32 %v26, %v28
  %30 = vst [vmem:[%s5] sm:$0x1] %v29
  // Predicated region
  $region18: #{s3cl_forward.8} parent=0 // pred_check
    _
  $region19: #{s3cl_forward.8} parent=0 // pred_check_branch
    %32 = sbr.rel (0) target = $region21
  $region20: #{s3cl_forward.8} parent=0 // pred_region
    _
  $region21: #{s3cl_forward.8} parent=0 // pred_fallthru
    _
  // Predicated region
  $region22: #{s3cl_forward.8} parent=0 // pred_check
    _
  $region23: #{s3cl_forward.8} parent=0 // pred_check_branch
    %34 = sbr.rel (0) target = $region25
  $region24: #{s3cl_forward.8} parent=0 // pred_region
    _
  $region25: #{s3cl_forward.8} parent=0 // pred_fallthru
    _
  // Predicated region
  $region26: #{s3cl_forward.8} parent=0 // pred_check
    _
  $region27: #{s3cl_forward.8} parent=0 // pred_check_branch
    %36 = sbr.rel (0) target = $region29
  $region28: #{s3cl_forward.8} parent=0 // pred_region
    _
  $region29: #{s3cl_forward.8} parent=0 // pred_fallthru
    _
  // Predicated region
  $region30: #{s3cl_forward.8} parent=0 // pred_check
    _
  $region31: #{s3cl_forward.8} parent=0 // pred_check_branch
    %38 = sbr.rel (0) target = $region33
  $region32: #{s3cl_forward.8} parent=0 // pred_region
    _
  $region33: #{s3cl_forward.8} parent=0 // pred_fallthru
    _

// kernel: s3cl_forward.7
$region0: #{s3cl_forward.7}
  #allocation0 [shape = 'u32[]', space=smem, size = 0x4, offset = 0x4, fixed_abs, tag = 'smem constant byte address 0x4 - core index']
  #allocation1 [shape = 'u32[144,128]{1,0:T(1,128)}', space=vmem, size = 0x12000, scoped, tag = 'internal scratch']
  %s0 = inlined_call_operand.vmem [shape: f32[128,128], index: 0, kind: input, shape index: {}]
  %s1 = inlined_call_operand.vmem [shape: f32[128,128], index: 1, kind: input, shape index: {}]
  %s2 = inlined_call_operand.vmem [shape: f32[128,128], index: 2, kind: output, shape index: {0}]
  %s3 = inlined_call_operand.vmem [shape: bf16[128,128], index: 3, kind: output, shape index: {1}]
  %s4 = inlined_call_operand.vmem [shape: bf16[128,128], index: 4, kind: output, shape index: {2}]
  %5 = xla_tuple %s2, %s3, %s4
  %s6 = sld [smem:[#allocation0]]
  $region34: #{s3cl_forward.7} parent=0
    _
  %s8 = ssub.s32 1, %s6
  %s9 = scalar_select 0, %s8, %s6
  // Predicated region
  $region2: #{s3cl_forward.7} parent=0 // pred_check
    _
  $region3: #{s3cl_forward.7} parent=0 // pred_check_branch
    %11 = sbr.rel (0) target = $region5
  $region4: #{s3cl_forward.7} parent=0 // pred_region
    _
  $region5: #{s3cl_forward.7} parent=0 // pred_fallthru
    _
  // Predicated region
  $region6: #{s3cl_forward.7} parent=0 // pred_check
    _
  $region7: #{s3cl_forward.7} parent=0 // pred_check_branch
    %13 = sbr.rel (0) target = $region9
  $region8: #{s3cl_forward.7} parent=0 // pred_region
    _
  $region9: #{s3cl_forward.7} parent=0 // pred_fallthru
    _
  %v14 = vld [vmem:[%s1] sm:$0xff]
  %v15 = vld [vmem:[%s1 + $0x8] sm:$0xff]
  %v16 = vld [vmem:[%s1 + $0x10] sm:$0xff]
  %v17 = vld [vmem:[%s1 + $0x18] sm:$0xff]
  %v18 = vld [vmem:[%s1 + $0x20] sm:$0xff]
  %v19 = vld [vmem:[%s1 + $0x28] sm:$0xff]
  %v20 = vld [vmem:[%s1 + $0x30] sm:$0xff]
  %v21 = vld [vmem:[%s1 + $0x38] sm:$0xff]
  %v22 = vld [vmem:[%s1 + $0x40] sm:$0xff]
  %v23 = vld [vmem:[%s1 + $0x48] sm:$0xff]
  %v24 = vld [vmem:[%s1 + $0x50] sm:$0xff]
  %v25 = vld [vmem:[%s1 + $0x58] sm:$0xff]
  %v26 = vld [vmem:[%s1 + $0x60] sm:$0xff]
  %v27 = vld [vmem:[%s1 + $0x68] sm:$0xff]
  %v28 = vld [vmem:[%s1 + $0x70] sm:$0xff]
  %v29 = vld [vmem:[%s1 + $0x78] sm:$0xff]
  %v30 = vld [vmem:[%s0] sm:$0xff]
  %v31 = vld [vmem:[%s0 + $0x8] sm:$0xff]
  %v32 = vld [vmem:[%s0 + $0x10] sm:$0xff]
  %v33 = vld [vmem:[%s0 + $0x18] sm:$0xff]
  %v34 = vld [vmem:[%s0 + $0x20] sm:$0xff]
  %v35 = vld [vmem:[%s0 + $0x28] sm:$0xff]
  %v36 = vld [vmem:[%s0 + $0x30] sm:$0xff]
  %v37 = vld [vmem:[%s0 + $0x38] sm:$0xff]
  %v38 = vld [vmem:[%s0 + $0x40] sm:$0xff]
  %v39 = vld [vmem:[%s0 + $0x48] sm:$0xff]
  %v40 = vld [vmem:[%s0 + $0x50] sm:$0xff]
  %v41 = vld [vmem:[%s0 + $0x58] sm:$0xff]
  %v42 = vld [vmem:[%s0 + $0x60] sm:$0xff]
  %v43 = vld [vmem:[%s0 + $0x68] sm:$0xff]
  %v44 = vld [vmem:[%s0 + $0x70] sm:$0xff]
  %v45 = vld [vmem:[%s0 + $0x78] sm:$0xff]
  %v46 = vmul.f32 %v30, 0.99
  %v47 = vmul.f32 %v31, 0.99
  %v48 = vmul.f32 %v32, 0.99
  %v49 = vmul.f32 %v33, 0.99
  %v50 = vmul.f32 %v34, 0.99
  %v51 = vmul.f32 %v35, 0.99
  %v52 = vmul.f32 %v36, 0.99
  %v53 = vmul.f32 %v37, 0.99
  %v54 = vmul.f32 %v38, 0.99
  %v55 = vmul.f32 %v39, 0.99
  %v56 = vmul.f32 %v40, 0.99
  %v57 = vmul.f32 %v41, 0.99
  %v58 = vmul.f32 %v42, 0.99
  %v59 = vmul.f32 %v43, 0.99
  %v60 = vmul.f32 %v44, 0.99
  %v61 = vmul.f32 %v45, 0.99
  %v62 = vmul.f32 %v14, 0.01
  %v63 = vmul.f32 %v15, 0.01
  %v64 = vmul.f32 %v16, 0.01
  %v65 = vmul.f32 %v17, 0.01
  %v66 = vmul.f32 %v18, 0.01
  %v67 = vmul.f32 %v19, 0.01
  %v68 = vmul.f32 %v20, 0.01
  %v69 = vmul.f32 %v21, 0.01
  %v70 = vmul.f32 %v22, 0.01
  %v71 = vmul.f32 %v23, 0.01
  %v72 = vmul.f32 %v24, 0.01
  %v73 = vmul.f32 %v25, 0.01
  %v74 = vmul.f32 %v26, 0.01
  %v75 = vmul.f32 %v27, 0.01
  %v76 = vmul.f32 %v28, 0.01
  %v77 = vmul.f32 %v29, 0.01
  %v78 = vadd.f32 %v46, %v62
  %v79 = vadd.f32 %v47, %v63
  %v80 = vadd.f32 %v48, %v64
  %v81 = vadd.f32 %v49, %v65
  %v82 = vadd.f32 %v50, %v66
  %v83 = vadd.f32 %v51, %v67
  %v84 = vadd.f32 %v52, %v68
  %v85 = vadd.f32 %v53, %v69
  %v86 = vadd.f32 %v54, %v70
  %v87 = vadd.f32 %v55, %v71
  %v88 = vadd.f32 %v56, %v72
  %v89 = vadd.f32 %v57, %v73
  %v90 = vadd.f32 %v58, %v74
  %v91 = vadd.f32 %v59, %v75
  %v92 = vadd.f32 %v60, %v76
  %v93 = vadd.f32 %v61, %v77
  %94 = vst [vmem:[%s2] sm:$0xff] %v78
  %95 = vst [vmem:[%s2 + $0x8] sm:$0xff] %v79
  %96 = vst [vmem:[%s2 + $0x10] sm:$0xff] %v80
  %97 = vst [vmem:[%s2 + $0x18] sm:$0xff] %v81
  %98 = vst [vmem:[%s2 + $0x20] sm:$0xff] %v82
  %99 = vst [vmem:[%s2 + $0x28] sm:$0xff] %v83
  %100 = vst [vmem:[%s2 + $0x30] sm:$0xff] %v84
  %101 = vst [vmem:[%s2 + $0x38] sm:$0xff] %v85
  %102 = vst [vmem:[%s2 + $0x40] sm:$0xff] %v86
  %103 = vst [vmem:[%s2 + $0x48] sm:$0xff] %v87
  %104 = vst [vmem:[%s2 + $0x50] sm:$0xff] %v88
  %105 = vst [vmem:[%s2 + $0x58] sm:$0xff] %v89
  %106 = vst [vmem:[%s2 + $0x60] sm:$0xff] %v90
  %107 = vst [vmem:[%s2 + $0x68] sm:$0xff] %v91
  %108 = vst [vmem:[%s2 + $0x70] sm:$0xff] %v92
  %109 = vst [vmem:[%s2 + $0x78] sm:$0xff] %v93
  %v110 = vpack.c.bf16 %v79, %v78
  %v111 = vpack.c.bf16 %v81, %v80
  %v112 = vpack.c.bf16 %v83, %v82
  %v113 = vpack.c.bf16 %v85, %v84
  %v114 = vpack.c.bf16 %v87, %v86
  %v115 = vpack.c.bf16 %v89, %v88
  %v116 = vpack.c.bf16 %v91, %v90
  %v117 = vpack.c.bf16 %v93, %v92
  %v126 = vunpack.c.l.b16 %v110
  %v127 = vunpack.c.h.b16 %v110
  %v128 = vunpack.c.l.b16 %v111
  %v129 = vunpack.c.h.b16 %v111
  %v130 = vunpack.c.l.b16 %v112
  %v131 = vunpack.c.h.b16 %v112
  %v132 = vunpack.c.l.b16 %v113
  %v133 = vunpack.c.h.b16 %v113
  %v134 = vunpack.c.l.b16 %v114
  %v135 = vunpack.c.h.b16 %v114
  %v136 = vunpack.c.l.b16 %v115
  %v137 = vunpack.c.h.b16 %v115
  %v138 = vunpack.c.l.b16 %v116
  %v139 = vunpack.c.h.b16 %v116
  %v140 = vunpack.c.l.b16 %v117
  %v141 = vunpack.c.h.b16 %v117
  %v142 = vpack.c.b16 %v126, %v126
  %v143 = vpack.c.b16 %v127, %v127
  %v144 = vpack.c.b16 %v128, %v128
  %v145 = vpack.c.b16 %v129, %v129
  %v146 = vpack.c.b16 %v130, %v130
  %v147 = vpack.c.b16 %v131, %v131
  %v148 = vpack.c.b16 %v132, %v132
  %v149 = vpack.c.b16 %v133, %v133
  %v150 = vpack.c.b16 %v134, %v134
  %v151 = vpack.c.b16 %v135, %v135
  %v152 = vpack.c.b16 %v136, %v136
  %v153 = vpack.c.b16 %v137, %v137
  %v154 = vpack.c.b16 %v138, %v138
  %v155 = vpack.c.b16 %v139, %v139
  %v156 = vpack.c.b16 %v140, %v140
  %v157 = vpack.c.b16 %v141, %v141
  %174 = vst [vmem:[%s3] sm:$0xf] %v142
  %175 = vst [vmem:[%s3 + $0x4] sm:$0xf] %v143
  %176 = vst [vmem:[%s3 + $0x8] sm:$0xf] %v144
  %177 = vst [vmem:[%s3 + $0xc] sm:$0xf] %v145
  %178 = vst [vmem:[%s3 + $0x10] sm:$0xf] %v146
  %179 = vst [vmem:[%s3 + $0x14] sm:$0xf] %v147
  %180 = vst [vmem:[%s3 + $0x18] sm:$0xf] %v148
  %181 = vst [vmem:[%s3 + $0x1c] sm:$0xf] %v149
  %182 = vst [vmem:[%s3 + $0x20] sm:$0xf] %v150
  %183 = vst [vmem:[%s3 + $0x24] sm:$0xf] %v151
  %184 = vst [vmem:[%s3 + $0x28] sm:$0xf] %v152
  %185 = vst [vmem:[%s3 + $0x2c] sm:$0xf] %v153
  %186 = vst [vmem:[%s3 + $0x30] sm:$0xf] %v154
  %187 = vst [vmem:[%s3 + $0x34] sm:$0xf] %v155
  %188 = vst [vmem:[%s3 + $0x38] sm:$0xf] %v156
  %189 = vst [vmem:[%s3 + $0x3c] sm:$0xf] %v157
  %v190 = vpack.c.bf16 %v15, %v14
  %v191 = vpack.c.bf16 %v17, %v16
  %v192 = vpack.c.bf16 %v19, %v18
  %v193 = vpack.c.bf16 %v21, %v20
  %v194 = vpack.c.bf16 %v23, %v22
  %v195 = vpack.c.bf16 %v25, %v24
  %v196 = vpack.c.bf16 %v27, %v26
  %v197 = vpack.c.bf16 %v29, %v28
  %v206 = vunpack.c.l.b16 %v190
  %v207 = vunpack.c.h.b16 %v190
  %v208 = vunpack.c.l.b16 %v191
  %v209 = vunpack.c.h.b16 %v191
  %v210 = vunpack.c.l.b16 %v192
  %v211 = vunpack.c.h.b16 %v192
  %v212 = vunpack.c.l.b16 %v193
  %v213 = vunpack.c.h.b16 %v193
  %v214 = vunpack.c.l.b16 %v194
  %v215 = vunpack.c.h.b16 %v194
  %v216 = vunpack.c.l.b16 %v195
  %v217 = vunpack.c.h.b16 %v195
  %v218 = vunpack.c.l.b16 %v196
  %v219 = vunpack.c.h.b16 %v196
  %v220 = vunpack.c.l.b16 %v197
  %v221 = vunpack.c.h.b16 %v197
  %v222 = vpack.c.b16 %v206, %v206
  %v223 = vpack.c.b16 %v207, %v207
  %v224 = vpack.c.b16 %v208, %v208
  %v225 = vpack.c.b16 %v209, %v209
  %v226 = vpack.c.b16 %v210, %v210
  %v227 = vpack.c.b16 %v211, %v211
  %v228 = vpack.c.b16 %v212, %v212
  %v229 = vpack.c.b16 %v213, %v213
  %v230 = vpack.c.b16 %v214, %v214
  %v231 = vpack.c.b16 %v215, %v215
  %v232 = vpack.c.b16 %v216, %v216
  %v233 = vpack.c.b16 %v217, %v217
  %v234 = vpack.c.b16 %v218, %v218
  %v235 = vpack.c.b16 %v219, %v219
  %v236 = vpack.c.b16 %v220, %v220
  %v237 = vpack.c.b16 %v221, %v221
  %254 = vst [vmem:[%s4] sm:$0xf] %v222
  %255 = vst [vmem:[%s4 + $0x4] sm:$0xf] %v223
  %256 = vst [vmem:[%s4 + $0x8] sm:$0xf] %v224
  %257 = vst [vmem:[%s4 + $0xc] sm:$0xf] %v225
  %258 = vst [vmem:[%s4 + $0x10] sm:$0xf] %v226
  %259 = vst [vmem:[%s4 + $0x14] sm:$0xf] %v227
  %260 = vst [vmem:[%s4 + $0x18] sm:$0xf] %v228
  %261 = vst [vmem:[%s4 + $0x1c] sm:$0xf] %v229
  %262 = vst [vmem:[%s4 + $0x20] sm:$0xf] %v230
  %263 = vst [vmem:[%s4 + $0x24] sm:$0xf] %v231
  %264 = vst [vmem:[%s4 + $0x28] sm:$0xf] %v232
  %265 = vst [vmem:[%s4 + $0x2c] sm:$0xf] %v233
  %266 = vst [vmem:[%s4 + $0x30] sm:$0xf] %v234
  %267 = vst [vmem:[%s4 + $0x34] sm:$0xf] %v235
  %268 = vst [vmem:[%s4 + $0x38] sm:$0xf] %v236
  %269 = vst [vmem:[%s4 + $0x3c] sm:$0xf] %v237
  // Predicated region
  $region10: #{s3cl_forward.7} parent=0 // pred_check
    _
  $region11: #{s3cl_forward.7} parent=0 // pred_check_branch
    %271 = sbr.rel (0) target = $region13
  $region12: #{s3cl_forward.7} parent=0 // pred_region
    _
  $region13: #{s3cl_forward.7} parent=0 // pred_fallthru
    _
  // Predicated region
  $region14: #{s3cl_forward.7} parent=0 // pred_check
    _
  $region15: #{s3cl_forward.7} parent=0 // pred_check_branch
    %273 = sbr.rel (0) target = $region17
  $region16: #{s3cl_forward.7} parent=0 // pred_region
    _
  $region17: #{s3cl_forward.7} parent=0 // pred_fallthru
    _
  // Predicated region
  $region18: #{s3cl_forward.7} parent=0 // pred_check
    _
  $region19: #{s3cl_forward.7} parent=0 // pred_check_branch
    %275 = sbr.rel (0) target = $region21
  $region20: #{s3cl_forward.7} parent=0 // pred_region
    _
  $region21: #{s3cl_forward.7} parent=0 // pred_fallthru
    _
  // Predicated region
  $region22: #{s3cl_forward.7} parent=0 // pred_check
    _
  $region23: #{s3cl_forward.7} parent=0 // pred_check_branch
    %277 = sbr.rel (0) target = $region25
  $region24: #{s3cl_forward.7} parent=0 // pred_region
    _
  $region25: #{s3cl_forward.7} parent=0 // pred_fallthru
    _
  // Predicated region
  $region26: #{s3cl_forward.7} parent=0 // pred_check
    _
  $region27: #{s3cl_forward.7} parent=0 // pred_check_branch
    %279 = sbr.rel (0) target = $region29
  $region28: #{s3cl_forward.7} parent=0 // pred_region
    _
  $region29: #{s3cl_forward.7} parent=0 // pred_fallthru
    _
  // Predicated region
  $region30: #{s3cl_forward.7} parent=0 // pred_check
    _
  $region31: #{s3cl_forward.7} parent=0 // pred_check_branch
    %281 = sbr.rel (0) target = $region33
  $region32: #{s3cl_forward.7} parent=0 // pred_region
    _
  $region33: #{s3cl_forward.7} parent=0 // pred_fallthru
    _

// kernel: s3cl_forward.5
$region0: #{s3cl_forward.5}
  #allocation0 [shape = 'u32[]', space=smem, size = 0x4, offset = 0x4, fixed_abs, tag = 'smem constant byte address 0x4 - core index']
  #allocation1 [shape = 'u32[144,128]{1,0:T(1,128)}', space=vmem, size = 0x12000, scoped, tag = 'internal scratch']
  %s0 = inlined_call_operand.vmem [shape: f32[128,128], index: 0, kind: input, shape index: {}]
  %s1 = inlined_call_operand.vmem [shape: f32[128,128], index: 1, kind: input, shape index: {}]
  %s2 = inlined_call_operand.vmem [shape: f32[128,128], index: 2, kind: output, shape index: {0}]
  %s3 = inlined_call_operand.vmem [shape: bf16[128,256], index: 3, kind: output, shape index: {1}]
  %4 = xla_tuple %s2, %s3
  %s5 = sld [smem:[#allocation0]]
  $region26: #{s3cl_forward.5} parent=0
    _
  %s7 = ssub.s32 1, %s5
  %s8 = scalar_select 0, %s7, %s5
  // Predicated region
  $region2: #{s3cl_forward.5} parent=0 // pred_check
    _
  $region3: #{s3cl_forward.5} parent=0 // pred_check_branch
    %10 = sbr.rel (0) target = $region5
  $region4: #{s3cl_forward.5} parent=0 // pred_region
    _
  $region5: #{s3cl_forward.5} parent=0 // pred_fallthru
    _
  // Predicated region
  $region6: #{s3cl_forward.5} parent=0 // pred_check
    _
  $region7: #{s3cl_forward.5} parent=0 // pred_check_branch
    %12 = sbr.rel (0) target = $region9
  $region8: #{s3cl_forward.5} parent=0 // pred_region
    _
  $region9: #{s3cl_forward.5} parent=0 // pred_fallthru
    _
  %v13 = vld [vmem:[%s1] sm:$0xff]
  %v14 = vld [vmem:[%s1 + $0x8] sm:$0xff]
  %v15 = vld [vmem:[%s1 + $0x10] sm:$0xff]
  %v16 = vld [vmem:[%s1 + $0x18] sm:$0xff]
  %v17 = vld [vmem:[%s1 + $0x20] sm:$0xff]
  %v18 = vld [vmem:[%s1 + $0x28] sm:$0xff]
  %v19 = vld [vmem:[%s1 + $0x30] sm:$0xff]
  %v20 = vld [vmem:[%s1 + $0x38] sm:$0xff]
  %v21 = vld [vmem:[%s1 + $0x40] sm:$0xff]
  %v22 = vld [vmem:[%s1 + $0x48] sm:$0xff]
  %v23 = vld [vmem:[%s1 + $0x50] sm:$0xff]
  %v24 = vld [vmem:[%s1 + $0x58] sm:$0xff]
  %v25 = vld [vmem:[%s1 + $0x60] sm:$0xff]
  %v26 = vld [vmem:[%s1 + $0x68] sm:$0xff]
  %v27 = vld [vmem:[%s1 + $0x70] sm:$0xff]
  %v28 = vld [vmem:[%s1 + $0x78] sm:$0xff]
  %v29 = vld [vmem:[%s0] sm:$0xff]
  %v30 = vld [vmem:[%s0 + $0x8] sm:$0xff]
  %v31 = vld [vmem:[%s0 + $0x10] sm:$0xff]
  %v32 = vld [vmem:[%s0 + $0x18] sm:$0xff]
  %v33 = vld [vmem:[%s0 + $0x20] sm:$0xff]
  %v34 = vld [vmem:[%s0 + $0x28] sm:$0xff]
  %v35 = vld [vmem:[%s0 + $0x30] sm:$0xff]
  %v36 = vld [vmem:[%s0 + $0x38] sm:$0xff]
  %v37 = vld [vmem:[%s0 + $0x40] sm:$0xff]
  %v38 = vld [vmem:[%s0 + $0x48] sm:$0xff]
  %v39 = vld [vmem:[%s0 + $0x50] sm:$0xff]
  %v40 = vld [vmem:[%s0 + $0x58] sm:$0xff]
  %v41 = vld [vmem:[%s0 + $0x60] sm:$0xff]
  %v42 = vld [vmem:[%s0 + $0x68] sm:$0xff]
  %v43 = vld [vmem:[%s0 + $0x70] sm:$0xff]
  %v44 = vld [vmem:[%s0 + $0x78] sm:$0xff]
  %v45 = vmul.f32 %v29, 0.99
  %v46 = vmul.f32 %v30, 0.99
  %v47 = vmul.f32 %v31, 0.99
  %v48 = vmul.f32 %v32, 0.99
  %v49 = vmul.f32 %v33, 0.99
  %v50 = vmul.f32 %v34, 0.99
  %v51 = vmul.f32 %v35, 0.99
  %v52 = vmul.f32 %v36, 0.99
  %v53 = vmul.f32 %v37, 0.99
  %v54 = vmul.f32 %v38, 0.99
  %v55 = vmul.f32 %v39, 0.99
  %v56 = vmul.f32 %v40, 0.99
  %v57 = vmul.f32 %v41, 0.99
  %v58 = vmul.f32 %v42, 0.99
  %v59 = vmul.f32 %v43, 0.99
  %v60 = vmul.f32 %v44, 0.99
  %v61 = vmul.f32 %v13, 0.01
  %v62 = vmul.f32 %v14, 0.01
  %v63 = vmul.f32 %v15, 0.01
  %v64 = vmul.f32 %v16, 0.01
  %v65 = vmul.f32 %v17, 0.01
  %v66 = vmul.f32 %v18, 0.01
  %v67 = vmul.f32 %v19, 0.01
  %v68 = vmul.f32 %v20, 0.01
  %v69 = vmul.f32 %v21, 0.01
  %v70 = vmul.f32 %v22, 0.01
  %v71 = vmul.f32 %v23, 0.01
  %v72 = vmul.f32 %v24, 0.01
  %v73 = vmul.f32 %v25, 0.01
  %v74 = vmul.f32 %v26, 0.01
  %v75 = vmul.f32 %v27, 0.01
  %v76 = vmul.f32 %v28, 0.01
  %v77 = vadd.f32 %v45, %v61
  %v78 = vadd.f32 %v46, %v62
  %v79 = vadd.f32 %v47, %v63
  %v80 = vadd.f32 %v48, %v64
  %v81 = vadd.f32 %v49, %v65
  %v82 = vadd.f32 %v50, %v66
  %v83 = vadd.f32 %v51, %v67
  %v84 = vadd.f32 %v52, %v68
  %v85 = vadd.f32 %v53, %v69
  %v86 = vadd.f32 %v54, %v70
  %v87 = vadd.f32 %v55, %v71
  %v88 = vadd.f32 %v56, %v72
  %v89 = vadd.f32 %v57, %v73
  %v90 = vadd.f32 %v58, %v74
  %v91 = vadd.f32 %v59, %v75
  %v92 = vadd.f32 %v60, %v76
  %93 = vst [vmem:[%s2] sm:$0xff] %v77
  %94 = vst [vmem:[%s2 + $0x8] sm:$0xff] %v78
  %95 = vst [vmem:[%s2 + $0x10] sm:$0xff] %v79
  %96 = vst [vmem:[%s2 + $0x18] sm:$0xff] %v80
  %97 = vst [vmem:[%s2 + $0x20] sm:$0xff] %v81
  %98 = vst [vmem:[%s2 + $0x28] sm:$0xff] %v82
  %99 = vst [vmem:[%s2 + $0x30] sm:$0xff] %v83
  %100 = vst [vmem:[%s2 + $0x38] sm:$0xff] %v84
  %101 = vst [vmem:[%s2 + $0x40] sm:$0xff] %v85
  %102 = vst [vmem:[%s2 + $0x48] sm:$0xff] %v86
  %103 = vst [vmem:[%s2 + $0x50] sm:$0xff] %v87
  %104 = vst [vmem:[%s2 + $0x58] sm:$0xff] %v88
  %105 = vst [vmem:[%s2 + $0x60] sm:$0xff] %v89
  %106 = vst [vmem:[%s2 + $0x68] sm:$0xff] %v90
  %107 = vst [vmem:[%s2 + $0x70] sm:$0xff] %v91
  %108 = vst [vmem:[%s2 + $0x78] sm:$0xff] %v92
  %v109 = vpack.c.bf16 %v14, %v13
  %v110 = vpack.c.bf16 %v16, %v15
  %v111 = vpack.c.bf16 %v18, %v17
  %v112 = vpack.c.bf16 %v20, %v19
  %v113 = vpack.c.bf16 %v22, %v21
  %v114 = vpack.c.bf16 %v24, %v23
  %v115 = vpack.c.bf16 %v26, %v25
  %v116 = vpack.c.bf16 %v28, %v27
  %v125 = vunpack.c.l.b16 %v109
  %v126 = vunpack.c.h.b16 %v109
  %v127 = vunpack.c.l.b16 %v110
  %v128 = vunpack.c.h.b16 %v110
  %v129 = vunpack.c.l.b16 %v111
  %v130 = vunpack.c.h.b16 %v111
  %v131 = vunpack.c.l.b16 %v112
  %v132 = vunpack.c.h.b16 %v112
  %v133 = vunpack.c.l.b16 %v113
  %v134 = vunpack.c.h.b16 %v113
  %v135 = vunpack.c.l.b16 %v114
  %v136 = vunpack.c.h.b16 %v114
  %v137 = vunpack.c.l.b16 %v115
  %v138 = vunpack.c.h.b16 %v115
  %v139 = vunpack.c.l.b16 %v116
  %v140 = vunpack.c.h.b16 %v116
  %v141 = vpack.c.b16 %v125, %v125
  %v142 = vpack.c.b16 %v126, %v126
  %v143 = vpack.c.b16 %v127, %v127
  %v144 = vpack.c.b16 %v128, %v128
  %v145 = vpack.c.b16 %v129, %v129
  %v146 = vpack.c.b16 %v130, %v130
  %v147 = vpack.c.b16 %v131, %v131
  %v148 = vpack.c.b16 %v132, %v132
  %v149 = vpack.c.b16 %v133, %v133
  %v150 = vpack.c.b16 %v134, %v134
  %v151 = vpack.c.b16 %v135, %v135
  %v152 = vpack.c.b16 %v136, %v136
  %v153 = vpack.c.b16 %v137, %v137
  %v154 = vpack.c.b16 %v138, %v138
  %v155 = vpack.c.b16 %v139, %v139
  %v156 = vpack.c.b16 %v140, %v140
  %173 = vst [vmem:[%s3] sm:$0xf] %v141
  %174 = vst [vmem:[%s3 + $0x8] sm:$0xf] %v142
  %175 = vst [vmem:[%s3 + $0x10] sm:$0xf] %v143
  %176 = vst [vmem:[%s3 + $0x18] sm:$0xf] %v144
  %177 = vst [vmem:[%s3 + $0x20] sm:$0xf] %v145
  %178 = vst [vmem:[%s3 + $0x28] sm:$0xf] %v146
  %179 = vst [vmem:[%s3 + $0x30] sm:$0xf] %v147
  %180 = vst [vmem:[%s3 + $0x38] sm:$0xf] %v148
  %181 = vst [vmem:[%s3 + $0x40] sm:$0xf] %v149
  %182 = vst [vmem:[%s3 + $0x48] sm:$0xf] %v150
  %183 = vst [vmem:[%s3 + $0x50] sm:$0xf] %v151
  %184 = vst [vmem:[%s3 + $0x58] sm:$0xf] %v152
  %185 = vst [vmem:[%s3 + $0x60] sm:$0xf] %v153
  %186 = vst [vmem:[%s3 + $0x68] sm:$0xf] %v154
  %187 = vst [vmem:[%s3 + $0x70] sm:$0xf] %v155
  %188 = vst [vmem:[%s3 + $0x78] sm:$0xf] %v156
  %v189 = vpack.c.bf16 %v78, %v77
  %v190 = vpack.c.bf16 %v80, %v79
  %v191 = vpack.c.bf16 %v82, %v81
  %v192 = vpack.c.bf16 %v84, %v83
  %v193 = vpack.c.bf16 %v86, %v85
  %v194 = vpack.c.bf16 %v88, %v87
  %v195 = vpack.c.bf16 %v90, %v89
  %v196 = vpack.c.bf16 %v92, %v91
  %v205 = vunpack.c.l.b16 %v189
  %v206 = vunpack.c.h.b16 %v189
  %v207 = vunpack.c.l.b16 %v190
  %v208 = vunpack.c.h.b16 %v190
  %v209 = vunpack.c.l.b16 %v191
  %v210 = vunpack.c.h.b16 %v191
  %v211 = vunpack.c.l.b16 %v192
  %v212 = vunpack.c.h.b16 %v192
  %v213 = vunpack.c.l.b16 %v193
  %v214 = vunpack.c.h.b16 %v193
  %v215 = vunpack.c.l.b16 %v194
  %v216 = vunpack.c.h.b16 %v194
  %v217 = vunpack.c.l.b16 %v195
  %v218 = vunpack.c.h.b16 %v195
  %v219 = vunpack.c.l.b16 %v196
  %v220 = vunpack.c.h.b16 %v196
  %v221 = vpack.c.b16 %v205, %v205
  %v222 = vpack.c.b16 %v206, %v206
  %v223 = vpack.c.b16 %v207, %v207
  %v224 = vpack.c.b16 %v208, %v208
  %v225 = vpack.c.b16 %v209, %v209
  %v226 = vpack.c.b16 %v210, %v210
  %v227 = vpack.c.b16 %v211, %v211
  %v228 = vpack.c.b16 %v212, %v212
  %v229 = vpack.c.b16 %v213, %v213
  %v230 = vpack.c.b16 %v214, %v214
  %v231 = vpack.c.b16 %v215, %v215
  %v232 = vpack.c.b16 %v216, %v216
  %v233 = vpack.c.b16 %v217, %v217
  %v234 = vpack.c.b16 %v218, %v218
  %v235 = vpack.c.b16 %v219, %v219
  %v236 = vpack.c.b16 %v220, %v220
  %253 = vst [vmem:[%s3 + $0x4] sm:$0xf] %v221
  %254 = vst [vmem:[%s3 + $0xc] sm:$0xf] %v222
  %255 = vst [vmem:[%s3 + $0x14] sm:$0xf] %v223
  %256 = vst [vmem:[%s3 + $0x1c] sm:$0xf] %v224
  %257 = vst [vmem:[%s3 + $0x24] sm:$0xf] %v225
  %258 = vst [vmem:[%s3 + $0x2c] sm:$0xf] %v226
  %259 = vst [vmem:[%s3 + $0x34] sm:$0xf] %v227
  %260 = vst [vmem:[%s3 + $0x3c] sm:$0xf] %v228
  %261 = vst [vmem:[%s3 + $0x44] sm:$0xf] %v229
  %262 = vst [vmem:[%s3 + $0x4c] sm:$0xf] %v230
  %263 = vst [vmem:[%s3 + $0x54] sm:$0xf] %v231
  %264 = vst [vmem:[%s3 + $0x5c] sm:$0xf] %v232
  %265 = vst [vmem:[%s3 + $0x64] sm:$0xf] %v233
  %266 = vst [vmem:[%s3 + $0x6c] sm:$0xf] %v234
  %267 = vst [vmem:[%s3 + $0x74] sm:$0xf] %v235
  %268 = vst [vmem:[%s3 + $0x7c] sm:$0xf] %v236
  // Predicated region
  $region10: #{s3cl_forward.5} parent=0 // pred_check
    _
  $region11: #{s3cl_forward.5} parent=0 // pred_check_branch
    %270 = sbr.rel (0) target = $region13
  $region12: #{s3cl_forward.5} parent=0 // pred_region
    _
  $region13: #{s3cl_forward.5} parent=0 // pred_fallthru
    _
  // Predicated region
  $region14: #{s3cl_forward.5} parent=0 // pred_check
    _
  $region15: #{s3cl_forward.5} parent=0 // pred_check_branch
    %272 = sbr.rel (0) target = $region17
  $region16: #{s3cl_forward.5} parent=0 // pred_region
    _
  $region17: #{s3cl_forward.5} parent=0 // pred_fallthru
    _
  // Predicated region
  $region18: #{s3cl_forward.5} parent=0 // pred_check
    _
  $region19: #{s3cl_forward.5} parent=0 // pred_check_branch
    %274 = sbr.rel (0) target = $region21
  $region20: #{s3cl_forward.5} parent=0 // pred_region
    _
  $region21: #{s3cl_forward.5} parent=0 // pred_fallthru
    _
  // Predicated region
  $region22: #{s3cl_forward.5} parent=0 // pred_check
    _
  $region23: #{s3cl_forward.5} parent=0 // pred_check_branch
    %276 = sbr.rel (0) target = $region25
  $region24: #{s3cl_forward.5} parent=0 // pred_region
    _
  $region25: #{s3cl_forward.5} parent=0 // pred_fallthru
    _

// kernel: s3cl_forward.9
$region0: #{s3cl_forward.9}
  #allocation0 [shape = 'u32[]', space=smem, size = 0x4, offset = 0x4, fixed_abs, tag = 'smem constant byte address 0x4 - core index']
  #allocation1 [shape = 'u32[144,128]{1,0:T(1,128)}', space=vmem, size = 0x12000, scoped, tag = 'internal scratch']
  %s0 = inlined_call_operand.vmem [shape: bf16[128,128], index: 0, kind: input, shape index: {}]
  %s1 = inlined_call_operand.vmem [shape: bf16[128,256], index: 1, kind: input, shape index: {}]
  %s2 = inlined_call_operand.vmem [shape: bf16[128,128], index: 2, kind: input, shape index: {}]
  %s3 = inlined_call_operand.vmem [shape: f32[1,128], index: 3, kind: input, shape index: {}]
  %s4 = inlined_call_operand.vmem [shape: bf16[128,128], index: 4, kind: input, shape index: {}]
  %s5 = inlined_call_operand.vmem [shape: f32[1,128], index: 5, kind: input, shape index: {}]
  %s6 = inlined_call_operand.vmem [shape: bf16[128,128], index: 6, kind: input, shape index: {}]
  %s7 = inlined_call_operand.vmem [shape: f32[1,128], index: 7, kind: input, shape index: {}]
  %s8 = inlined_call_operand.vmem [shape: bf16[128,128], index: 8, kind: input, shape index: {}]
  %s9 = inlined_call_operand.vmem [shape: f32[1,128], index: 9, kind: input, shape index: {}]
  %s10 = inlined_call_operand.vmem [shape: f32[128,128], index: 10, kind: output, shape index: {0}]
  %s11 = inlined_call_operand.vmem [shape: f32[128,128], index: 11, kind: output, shape index: {1}]
  %s12 = inlined_call_operand.vmem [shape: f32[128,128], index: 12, kind: output, shape index: {2}]
  %13 = xla_tuple %s10, %s11, %s12
  %s14 = sld [smem:[#allocation0]]
  $region66: #{s3cl_forward.9} parent=0
    _
  %s16 = ssub.s32 1, %s14
  %s17 = scalar_select 0, %s16, %s14
  // Predicated region
  $region2: #{s3cl_forward.9} parent=0 // pred_check
    _
  $region3: #{s3cl_forward.9} parent=0 // pred_check_branch
    %19 = sbr.rel (0) target = $region5
  $region4: #{s3cl_forward.9} parent=0 // pred_region
    _
  $region5: #{s3cl_forward.9} parent=0 // pred_fallthru
    _
  // Predicated region
  $region6: #{s3cl_forward.9} parent=0 // pred_check
    _
  $region7: #{s3cl_forward.9} parent=0 // pred_check_branch
    %21 = sbr.rel (0) target = $region9
  $region8: #{s3cl_forward.9} parent=0 // pred_region
    _
  $region9: #{s3cl_forward.9} parent=0 // pred_fallthru
    _
  // Predicated region
  $region10: #{s3cl_forward.9} parent=0 // pred_check
    _
  $region11: #{s3cl_forward.9} parent=0 // pred_check_branch
    %23 = sbr.rel (0) target = $region13
  $region12: #{s3cl_forward.9} parent=0 // pred_region
    _
  $region13: #{s3cl_forward.9} parent=0 // pred_fallthru
    _
  // Predicated region
  $region14: #{s3cl_forward.9} parent=0 // pred_check
    _
  $region15: #{s3cl_forward.9} parent=0 // pred_check_branch
    %25 = sbr.rel (0) target = $region17
  $region16: #{s3cl_forward.9} parent=0 // pred_region
    _
  $region17: #{s3cl_forward.9} parent=0 // pred_fallthru
    _
  // Predicated region
  $region18: #{s3cl_forward.9} parent=0 // pred_check
    _
  $region19: #{s3cl_forward.9} parent=0 // pred_check_branch
    %27 = sbr.rel (0) target = $region21
  $region20: #{s3cl_forward.9} parent=0 // pred_region
    _
  $region21: #{s3cl_forward.9} parent=0 // pred_fallthru
    _
  // Predicated region
  $region22: #{s3cl_forward.9} parent=0 // pred_check
    _
  $region23: #{s3cl_forward.9} parent=0 // pred_check_branch
    %29 = sbr.rel (0) target = $region25
  $region24: #{s3cl_forward.9} parent=0 // pred_region
    _
  $region25: #{s3cl_forward.9} parent=0 // pred_fallthru
    _
  // Predicated region
  $region26: #{s3cl_forward.9} parent=0 // pred_check
    _
  $region27: #{s3cl_forward.9} parent=0 // pred_check_branch
    %31 = sbr.rel (0) target = $region29
  $region28: #{s3cl_forward.9} parent=0 // pred_region
    _
  $region29: #{s3cl_forward.9} parent=0 // pred_fallthru
    _
  // Predicated region
  $region30: #{s3cl_forward.9} parent=0 // pred_check
    _
  $region31: #{s3cl_forward.9} parent=0 // pred_check_branch
    %33 = sbr.rel (0) target = $region33
  $region32: #{s3cl_forward.9} parent=0 // pred_region
    _
  $region33: #{s3cl_forward.9} parent=0 // pred_fallthru
    _
  // Predicated region
  $region34: #{s3cl_forward.9} parent=0 // pred_check
    _
  $region35: #{s3cl_forward.9} parent=0 // pred_check_branch
    %35 = sbr.rel (0) target = $region37
  $region36: #{s3cl_forward.9} parent=0 // pred_region
    _
  $region37: #{s3cl_forward.9} parent=0 // pred_fallthru
    _
  // Predicated region
  $region38: #{s3cl_forward.9} parent=0 // pred_check
    _
  $region39: #{s3cl_forward.9} parent=0 // pred_check_branch
    %37 = sbr.rel (0) target = $region41
  $region40: #{s3cl_forward.9} parent=0 // pred_region
    _
  $region41: #{s3cl_forward.9} parent=0 // pred_fallthru
    _
  %v39 = vld [vmem:[%s0] sm:$0xf]
  %v40 = vld [vmem:[%s0 + $0x4] sm:$0xf]
  %v41 = vld [vmem:[%s0 + $0x8] sm:$0xf]
  %v42 = vld [vmem:[%s0 + $0xc] sm:$0xf]
  %v43 = vld [vmem:[%s0 + $0x10] sm:$0xf]
  %v44 = vld [vmem:[%s0 + $0x14] sm:$0xf]
  %v45 = vld [vmem:[%s0 + $0x18] sm:$0xf]
  %v46 = vld [vmem:[%s0 + $0x1c] sm:$0xf]
  %v47 = vld [vmem:[%s0 + $0x20] sm:$0xf]
  %v48 = vld [vmem:[%s0 + $0x24] sm:$0xf]
  %v49 = vld [vmem:[%s0 + $0x28] sm:$0xf]
  %v50 = vld [vmem:[%s0 + $0x2c] sm:$0xf]
  %v51 = vld [vmem:[%s0 + $0x30] sm:$0xf]
  %v52 = vld [vmem:[%s0 + $0x34] sm:$0xf]
  %v53 = vld [vmem:[%s0 + $0x38] sm:$0xf]
  %v54 = vld [vmem:[%s0 + $0x3c] sm:$0xf]
  %v55 = vld [vmem:[%s1] sm:$0xff]
  %v56 = vld [vmem:[%s1 + $0x8] sm:$0xff]
  %v57 = vld [vmem:[%s1 + $0x10] sm:$0xff]
  %v58 = vld [vmem:[%s1 + $0x18] sm:$0xff]
  %v59 = vld [vmem:[%s1 + $0x20] sm:$0xff]
  %v60 = vld [vmem:[%s1 + $0x28] sm:$0xff]
  %v61 = vld [vmem:[%s1 + $0x30] sm:$0xff]
  %v62 = vld [vmem:[%s1 + $0x38] sm:$0xff]
  %v63 = vld [vmem:[%s1 + $0x40] sm:$0xff]
  %v64 = vld [vmem:[%s1 + $0x48] sm:$0xff]
  %v65 = vld [vmem:[%s1 + $0x50] sm:$0xff]
  %v66 = vld [vmem:[%s1 + $0x58] sm:$0xff]
  %v67 = vld [vmem:[%s1 + $0x60] sm:$0xff]
  %v68 = vld [vmem:[%s1 + $0x68] sm:$0xff]
  %v69 = vld [vmem:[%s1 + $0x70] sm:$0xff]
  %v70 = vld [vmem:[%s1 + $0x78] sm:$0xff]
  %v87 = vunpack.c.l.b16 %v39
  %v88 = vunpack.c.l.b16 %v40
  %v89 = vunpack.c.l.b16 %v41
  %v90 = vunpack.c.l.b16 %v42
  %v91 = vunpack.c.l.b16 %v43
  %v92 = vunpack.c.l.b16 %v44
  %v93 = vunpack.c.l.b16 %v45
  %v94 = vunpack.c.l.b16 %v46
  %v95 = vunpack.c.l.b16 %v47
  %v96 = vunpack.c.l.b16 %v48
  %v97 = vunpack.c.l.b16 %v49
  %v98 = vunpack.c.l.b16 %v50
  %v99 = vunpack.c.l.b16 %v51
  %v100 = vunpack.c.l.b16 %v52
  %v101 = vunpack.c.l.b16 %v53
  %v102 = vunpack.c.l.b16 %v54
  %v103 = vpack.c.b16 %v88, %v87
  %v104 = vpack.c.b16 %v90, %v89
  %v105 = vpack.c.b16 %v92, %v91
  %v106 = vpack.c.b16 %v94, %v93
  %v107 = vpack.c.b16 %v96, %v95
  %v108 = vpack.c.b16 %v98, %v97
  %v109 = vpack.c.b16 %v100, %v99
  %v110 = vpack.c.b16 %v102, %v101
  %v135 = vunpack.c.l.b16 %v55
  %v136 = vunpack.c.h.b16 %v55
  %v137 = vunpack.c.l.b16 %v56
  %v138 = vunpack.c.h.b16 %v56
  %v139 = vunpack.c.l.b16 %v57
  %v140 = vunpack.c.h.b16 %v57
  %v141 = vunpack.c.l.b16 %v58
  %v142 = vunpack.c.h.b16 %v58
  %v143 = vunpack.c.l.b16 %v59
  %v144 = vunpack.c.h.b16 %v59
  %v145 = vunpack.c.l.b16 %v60
  %v146 = vunpack.c.h.b16 %v60
  %v147 = vunpack.c.l.b16 %v61
  %v148 = vunpack.c.h.b16 %v61
  %v149 = vunpack.c.l.b16 %v62
  %v150 = vunpack.c.h.b16 %v62
  %v151 = vunpack.c.l.b16 %v63
  %v152 = vunpack.c.h.b16 %v63
  %v153 = vunpack.c.l.b16 %v64
  %v154 = vunpack.c.h.b16 %v64
  %v155 = vunpack.c.l.b16 %v65
  %v156 = vunpack.c.h.b16 %v65
  %v157 = vunpack.c.l.b16 %v66
  %v158 = vunpack.c.h.b16 %v66
  %v159 = vunpack.c.l.b16 %v67
  %v160 = vunpack.c.h.b16 %v67
  %v161 = vunpack.c.l.b16 %v68
  %v162 = vunpack.c.h.b16 %v68
  %v163 = vunpack.c.l.b16 %v69
  %v164 = vunpack.c.h.b16 %v69
  %v165 = vunpack.c.l.b16 %v70
  %v166 = vunpack.c.h.b16 %v70
  %v167 = vpack.c.b16 %v137, %v135
  %v168 = vpack.c.b16 %v138, %v136
  %v169 = vpack.c.b16 %v141, %v139
  %v170 = vpack.c.b16 %v142, %v140
  %v171 = vpack.c.b16 %v145, %v143
  %v172 = vpack.c.b16 %v146, %v144
  %v173 = vpack.c.b16 %v149, %v147
  %v174 = vpack.c.b16 %v150, %v148
  %v175 = vpack.c.b16 %v153, %v151
  %v176 = vpack.c.b16 %v154, %v152
  %v177 = vpack.c.b16 %v157, %v155
  %v178 = vpack.c.b16 %v158, %v156
  %v179 = vpack.c.b16 %v161, %v159
  %v180 = vpack.c.b16 %v162, %v160
  %v181 = vpack.c.b16 %v165, %v163
  %v182 = vpack.c.b16 %v166, %v164
  %199 = vmatprep.subr.bf16.mxu0 %v168
  %200 = vmatpush1.bf16.msra.mxu0 %v167
  %201 = vmatprep.subr.bf16.mxu0 %v170
  %202 = vmatpush1.bf16.msra.mxu0 %v169
  %203 = vmatprep.subr.bf16.mxu0 %v172
  %204 = vmatpush1.bf16.msra.mxu0 %v171
  %205 = vmatprep.subr.bf16.mxu0 %v174
  %206 = vmatpush1.bf16.msra.mxu0 %v173
  %207 = vmatprep.subr.bf16.mxu0 %v176
  %208 = vmatpush1.bf16.msra.mxu0 %v175
  %209 = vmatprep.subr.bf16.mxu0 %v178
  %210 = vmatpush1.bf16.msra.mxu0 %v177
  %211 = vmatprep.subr.bf16.mxu0 %v180
  %212 = vmatpush1.bf16.msra.mxu0 %v179
  %213 = vmatprep.subr.bf16.mxu0 %v182
  %214 = vmatpush1.bf16.msra.mxu0 %v181
  %215 = vmatprep.subr.bf16.mxu0 0
  %216 = vmatpush1.bf16.msra.mxu0 0
  %217 = vmatprep.subr.bf16.mxu0 0
  %218 = vmatpush1.bf16.msra.mxu0 0
  %219 = vmatprep.subr.bf16.mxu0 0
  %220 = vmatpush1.bf16.msra.mxu0 0
  %221 = vmatprep.subr.bf16.mxu0 0
  %222 = vmatpush1.bf16.msra.mxu0 0
  %223 = vmatprep.subr.bf16.mxu0 0
  %224 = vmatpush1.bf16.msra.mxu0 0
  %225 = vmatprep.subr.bf16.mxu0 0
  %226 = vmatpush1.bf16.msra.mxu0 0
  %227 = vmatprep.subr.bf16.mxu0 0
  %228 = vmatpush1.bf16.msra.mxu0 0
  %229 = vmatprep.subr.bf16.mxu0 0
  %230 = vmatpush1.bf16.msra.mxu0 0
  %231 = vmatprep.mubr.bf16.mxu0 0
  %232 = vmatmul.mubr.bf16.gmra.mrb[0].mxu0 %v103
  %v233 = vpop.f32.mrb[0].mxu0
  %v234 = vadd.f32 0.0, %v233
  %v235 = vpop.f32.mrb[0].mxu0
  %v236 = vadd.f32 0.0, %v235
  %v237 = vpop.f32.mrb[0].mxu0
  %v238 = vadd.f32 0.0, %v237
  %v239 = vpop.f32.mrb[0].mxu0
  %v240 = vadd.f32 0.0, %v239
  %241 = vmatprep.mubr.bf16.mxu0 0
  %242 = vmatmul.mubr.bf16.gmra.mrb[0].mxu0 %v104
  %v243 = vpop.f32.mrb[0].mxu0
  %v244 = vadd.f32 0.0, %v243
  %v245 = vpop.f32.mrb[0].mxu0
  %v246 = vadd.f32 0.0, %v245
  %v247 = vpop.f32.mrb[0].mxu0
  %v248 = vadd.f32 0.0, %v247
  %v249 = vpop.f32.mrb[0].mxu0
  %v250 = vadd.f32 0.0, %v249
  %251 = vmatprep.mubr.bf16.mxu0 0
  %252 = vmatmul.mubr.bf16.gmra.mrb[0].mxu0 %v105
  %v253 = vpop.f32.mrb[0].mxu0
  %v254 = vadd.f32 0.0, %v253
  %v255 = vpop.f32.mrb[0].mxu0
  %v256 = vadd.f32 0.0, %v255
  %v257 = vpop.f32.mrb[0].mxu0
  %v258 = vadd.f32 0.0, %v257
  %v259 = vpop.f32.mrb[0].mxu0
  %v260 = vadd.f32 0.0, %v259
  %261 = vmatprep.mubr.bf16.mxu0 0
  %262 = vmatmul.mubr.bf16.gmra.mrb[0].mxu0 %v106
  %v263 = vpop.f32.mrb[0].mxu0
  %v264 = vadd.f32 0.0, %v263
  %v265 = vpop.f32.mrb[0].mxu0
  %v266 = vadd.f32 0.0, %v265
  %v267 = vpop.f32.mrb[0].mxu0
  %v268 = vadd.f32 0.0, %v267
  %v269 = vpop.f32.mrb[0].mxu0
  %v270 = vadd.f32 0.0, %v269
  %271 = vmatprep.mubr.bf16.mxu0 0
  %272 = vmatmul.mubr.bf16.gmra.mrb[0].mxu0 %v107
  %v273 = vpop.f32.mrb[0].mxu0
  %v274 = vadd.f32 0.0, %v273
  %v275 = vpop.f32.mrb[0].mxu0
  %v276 = vadd.f32 0.0, %v275
  %v277 = vpop.f32.mrb[0].mxu0
  %v278 = vadd.f32 0.0, %v277
  %v279 = vpop.f32.mrb[0].mxu0
  %v280 = vadd.f32 0.0, %v279
  %281 = vmatprep.mubr.bf16.mxu0 0
  %282 = vmatmul.mubr.bf16.gmra.mrb[0].mxu0 %v108
  %v283 = vpop.f32.mrb[0].mxu0
  %v284 = vadd.f32 0.0, %v283
  %v285 = vpop.f32.mrb[0].mxu0
  %v286 = vadd.f32 0.0, %v285
  %v287 = vpop.f32.mrb[0].mxu0
  %v288 = vadd.f32 0.0, %v287
  %v289 = vpop.f32.mrb[0].mxu0
  %v290 = vadd.f32 0.0, %v289
  %291 = vmatprep.mubr.bf16.mxu0 0
  %292 = vmatmul.mubr.bf16.gmra.mrb[0].mxu0 %v109
  %v293 = vpop.f32.mrb[0].mxu0
  %v294 = vadd.f32 0.0, %v293
  %v295 = vpop.f32.mrb[0].mxu0
  %v296 = vadd.f32 0.0, %v295
  %v297 = vpop.f32.mrb[0].mxu0
  %v298 = vadd.f32 0.0, %v297
  %v299 = vpop.f32.mrb[0].mxu0
  %v300 = vadd.f32 0.0, %v299
  %301 = vmatprep.mubr.bf16.mxu0 0
  %302 = vmatmul.mubr.bf16.gmra.mrb[0].mxu0 %v110
  %v303 = vpop.f32.mrb[0].mxu0
  %v304 = vadd.f32 0.0, %v303
  %v305 = vpop.f32.mrb[0].mxu0
  %v306 = vadd.f32 0.0, %v305
  %v307 = vpop.f32.mrb[0].mxu0
  %v308 = vadd.f32 0.0, %v307
  %v309 = vpop.f32.mrb[0].mxu0
  %v310 = vadd.f32 0.0, %v309
  %311 = vdwg.mxu0
  %v312 = vmax.f32 %v234, 0.0
  %v313 = vmax.f32 %v236, 0.0
  %v314 = vmax.f32 %v238, 0.0
  %v315 = vmax.f32 %v240, 0.0
  %v316 = vmax.f32 %v244, 0.0
  %v317 = vmax.f32 %v246, 0.0
  %v318 = vmax.f32 %v248, 0.0
  %v319 = vmax.f32 %v250, 0.0
  %v320 = vmax.f32 %v254, 0.0
  %v321 = vmax.f32 %v256, 0.0
  %v322 = vmax.f32 %v258, 0.0
  %v323 = vmax.f32 %v260, 0.0
  %v324 = vmax.f32 %v264, 0.0
  %v325 = vmax.f32 %v266, 0.0
  %v326 = vmax.f32 %v268, 0.0
  %v327 = vmax.f32 %v270, 0.0
  %v328 = vmax.f32 %v274, 0.0
  %v329 = vmax.f32 %v276, 0.0
  %v330 = vmax.f32 %v278, 0.0
  %v331 = vmax.f32 %v280, 0.0
  %v332 = vmax.f32 %v284, 0.0
  %v333 = vmax.f32 %v286, 0.0
  %v334 = vmax.f32 %v288, 0.0
  %v335 = vmax.f32 %v290, 0.0
  %v336 = vmax.f32 %v294, 0.0
  %v337 = vmax.f32 %v296, 0.0
  %v338 = vmax.f32 %v298, 0.0
  %v339 = vmax.f32 %v300, 0.0
  %v340 = vmax.f32 %v304, 0.0
  %v341 = vmax.f32 %v306, 0.0
  %v342 = vmax.f32 %v308, 0.0
  %v343 = vmax.f32 %v310, 0.0
  %v344 = vpack.c.bf16 %v314, %v312
  %v345 = vpack.c.bf16 %v318, %v316
  %v346 = vpack.c.bf16 %v322, %v320
  %v347 = vpack.c.bf16 %v326, %v324
  %v348 = vpack.c.bf16 %v330, %v328
  %v349 = vpack.c.bf16 %v334, %v332
  %v350 = vpack.c.bf16 %v338, %v336
  %v351 = vpack.c.bf16 %v342, %v340
  %v352 = vld [vmem:[%s2] sm:$0xf]
  %v353 = vld [vmem:[%s2 + $0x4] sm:$0xf]
  %v354 = vld [vmem:[%s2 + $0x8] sm:$0xf]
  %v355 = vld [vmem:[%s2 + $0xc] sm:$0xf]
  %v356 = vld [vmem:[%s2 + $0x10] sm:$0xf]
  %v357 = vld [vmem:[%s2 + $0x14] sm:$0xf]
  %v358 = vld [vmem:[%s2 + $0x18] sm:$0xf]
  %v359 = vld [vmem:[%s2 + $0x1c] sm:$0xf]
  %v360 = vld [vmem:[%s2 + $0x20] sm:$0xf]
  %v361 = vld [vmem:[%s2 + $0x24] sm:$0xf]
  %v362 = vld [vmem:[%s2 + $0x28] sm:$0xf]
  %v363 = vld [vmem:[%s2 + $0x2c] sm:$0xf]
  %v364 = vld [vmem:[%s2 + $0x30] sm:$0xf]
  %v365 = vld [vmem:[%s2 + $0x34] sm:$0xf]
  %v366 = vld [vmem:[%s2 + $0x38] sm:$0xf]
  %v367 = vld [vmem:[%s2 + $0x3c] sm:$0xf]
  %v368 = vld [vmem:[%s3] sm:$0x1]
  %v370 = vlaneseq
  %v371 = vshrl.u32 %v370, 7
  %v372 = vsub.s32 0, %v371
  %v373 = vrot.slane %v368, %v372
  %v391 = vunpack.c.l.b16 %v352
  %v392 = vunpack.c.l.b16 %v353
  %v393 = vunpack.c.l.b16 %v354
  %v394 = vunpack.c.l.b16 %v355
  %v395 = vunpack.c.l.b16 %v356
  %v396 = vunpack.c.l.b16 %v357
  %v397 = vunpack.c.l.b16 %v358
  %v398 = vunpack.c.l.b16 %v359
  %v399 = vunpack.c.l.b16 %v360
  %v400 = vunpack.c.l.b16 %v361
  %v401 = vunpack.c.l.b16 %v362
  %v402 = vunpack.c.l.b16 %v363
  %v403 = vunpack.c.l.b16 %v364
  %v404 = vunpack.c.l.b16 %v365
  %v405 = vunpack.c.l.b16 %v366
  %v406 = vunpack.c.l.b16 %v367
  %v407 = vpack.c.b16 %v392, %v391
  %v408 = vpack.c.b16 %v394, %v393
  %v409 = vpack.c.b16 %v396, %v395
  %v410 = vpack.c.b16 %v398, %v397
  %v411 = vpack.c.b16 %v400, %v399
  %v412 = vpack.c.b16 %v402, %v401
  %v413 = vpack.c.b16 %v404, %v403
  %v414 = vpack.c.b16 %v406, %v405
  %423 = vmatprep.subr.bf16.mxu0 0
  %424 = vmatpush1.bf16.msra.mxu0 %v407
  %425 = vmatprep.subr.bf16.mxu0 0
  %426 = vmatpush1.bf16.msra.mxu0 %v408
  %427 = vmatprep.subr.bf16.mxu0 0
  %428 = vmatpush1.bf16.msra.mxu0 %v409
  %429 = vmatprep.subr.bf16.mxu0 0
  %430 = vmatpush1.bf16.msra.mxu0 %v410
  %431 = vmatprep.subr.bf16.mxu0 0
  %432 = vmatpush1.bf16.msra.mxu0 %v411
  %433 = vmatprep.subr.bf16.mxu0 0
  %434 = vmatpush1.bf16.msra.mxu0 %v412
  %435 = vmatprep.subr.bf16.mxu0 0
  %436 = vmatpush1.bf16.msra.mxu0 %v413
  %437 = vmatprep.subr.bf16.mxu0 0
  %438 = vmatpush1.bf16.msra.mxu0 %v414
  %439 = vmatprep.subr.bf16.mxu0 0
  %440 = vmatpush1.bf16.msra.mxu0 0
  %441 = vmatprep.subr.bf16.mxu0 0
  %442 = vmatpush1.bf16.msra.mxu0 0
  %443 = vmatprep.subr.bf16.mxu0 0
  %444 = vmatpush1.bf16.msra.mxu0 0
  %445 = vmatprep.subr.bf16.mxu0 0
  %446 = vmatpush1.bf16.msra.mxu0 0
  %447 = vmatprep.subr.bf16.mxu0 0
  %448 = vmatpush1.bf16.msra.mxu0 0
  %449 = vmatprep.subr.bf16.mxu0 0
  %450 = vmatpush1.bf16.msra.mxu0 0
  %451 = vmatprep.subr.bf16.mxu0 0
  %452 = vmatpush1.bf16.msra.mxu0 0
  %453 = vmatprep.subr.bf16.mxu0 0
  %454 = vmatpush1.bf16.msra.mxu0 0
  %455 = vmatprep.mubr.bf16.mxu0 0
  %456 = vmatmul.mubr.bf16.gmra.mrb[0].mxu0 %v344
  %v457 = vpop.f32.mrb[0].mxu0
  %v458 = vadd.f32 %v373, %v457
  %v459 = vpop.f32.mrb[0].mxu0
  %v460 = vpop.f32.mrb[0].mxu0
  %v461 = vadd.f32 %v373, %v460
  %v462 = vpop.f32.mrb[0].mxu0
  %463 = vmatprep.mubr.bf16.mxu0 0
  %464 = vmatmul.mubr.bf16.gmra.mrb[0].mxu0 %v345
  %v465 = vpop.f32.mrb[0].mxu0
  %v466 = vadd.f32 %v373, %v465
  %v467 = vpop.f32.mrb[0].mxu0
  %v468 = vpop.f32.mrb[0].mxu0
  %v469 = vadd.f32 %v373, %v468
  %v470 = vpop.f32.mrb[0].mxu0
  %471 = vmatprep.mubr.bf16.mxu0 0
  %472 = vmatmul.mubr.bf16.gmra.mrb[0].mxu0 %v346
  %v473 = vpop.f32.mrb[0].mxu0
  %v474 = vadd.f32 %v373, %v473
  %v475 = vpop.f32.mrb[0].mxu0
  %v476 = vpop.f32.mrb[0].mxu0
  %v477 = vadd.f32 %v373, %v476
  %v478 = vpop.f32.mrb[0].mxu0
  %479 = vmatprep.mubr.bf16.mxu0 0
  %480 = vmatmul.mubr.bf16.gmra.mrb[0].mxu0 %v347
  %v481 = vpop.f32.mrb[0].mxu0
  %v482 = vadd.f32 %v373, %v481
  %v483 = vpop.f32.mrb[0].mxu0
  %v484 = vpop.f32.mrb[0].mxu0
  %v485 = vadd.f32 %v373, %v484
  %v486 = vpop.f32.mrb[0].mxu0
  %487 = vmatprep.mubr.bf16.mxu0 0
  %488 = vmatmul.mubr.bf16.gmra.mrb[0].mxu0 %v348
  %v489 = vpop.f32.mrb[0].mxu0
  %v490 = vadd.f32 %v373, %v489
  %v491 = vpop.f32.mrb[0].mxu0
  %v492 = vpop.f32.mrb[0].mxu0
  %v493 = vadd.f32 %v373, %v492
  %v494 = vpop.f32.mrb[0].mxu0
  %495 = vmatprep.mubr.bf16.mxu0 0
  %496 = vmatmul.mubr.bf16.gmra.mrb[0].mxu0 %v349
  %v497 = vpop.f32.mrb[0].mxu0
  %v498 = vadd.f32 %v373, %v497
  %v499 = vpop.f32.mrb[0].mxu0
  %v500 = vpop.f32.mrb[0].mxu0
  %v501 = vadd.f32 %v373, %v500
  %v502 = vpop.f32.mrb[0].mxu0
  %503 = vmatprep.mubr.bf16.mxu0 0
  %504 = vmatmul.mubr.bf16.gmra.mrb[0].mxu0 %v350
  %v505 = vpop.f32.mrb[0].mxu0
  %v506 = vadd.f32 %v373, %v505
  %v507 = vpop.f32.mrb[0].mxu0
  %v508 = vpop.f32.mrb[0].mxu0
  %v509 = vadd.f32 %v373, %v508
  %v510 = vpop.f32.mrb[0].mxu0
  %511 = vmatprep.mubr.bf16.mxu0 0
  %512 = vmatmul.mubr.bf16.gmra.mrb[0].mxu0 %v351
  %v513 = vpop.f32.mrb[0].mxu0
  %v514 = vadd.f32 %v373, %v513
  %v515 = vpop.f32.mrb[0].mxu0
  %v516 = vpop.f32.mrb[0].mxu0
  %v517 = vadd.f32 %v373, %v516
  %v518 = vpop.f32.mrb[0].mxu0
  %519 = vdwg.mxu0
  %v520 = vmax.f32 %v458, 0.0
  %v521 = vmax.f32 %v461, 0.0
  %v522 = vmax.f32 %v466, 0.0
  %v523 = vmax.f32 %v469, 0.0
  %v524 = vmax.f32 %v474, 0.0
  %v525 = vmax.f32 %v477, 0.0
  %v526 = vmax.f32 %v482, 0.0
  %v527 = vmax.f32 %v485, 0.0
  %v528 = vmax.f32 %v490, 0.0
  %v529 = vmax.f32 %v493, 0.0
  %v530 = vmax.f32 %v498, 0.0
  %v531 = vmax.f32 %v501, 0.0
  %v532 = vmax.f32 %v506, 0.0
  %v533 = vmax.f32 %v509, 0.0
  %v534 = vmax.f32 %v514, 0.0
  %v535 = vmax.f32 %v517, 0.0
  %v536 = vpack.c.bf16 %v521, %v520
  %v537 = vpack.c.bf16 %v523, %v522
  %v538 = vpack.c.bf16 %v525, %v524
  %v539 = vpack.c.bf16 %v527, %v526
  %v540 = vpack.c.bf16 %v529, %v528
  %v541 = vpack.c.bf16 %v531, %v530
  %v542 = vpack.c.bf16 %v533, %v532
  %v543 = vpack.c.bf16 %v535, %v534
  %v544 = vld [vmem:[%s4] sm:$0xf]
  %v545 = vld [vmem:[%s4 + $0x4] sm:$0xf]
  %v546 = vld [vmem:[%s4 + $0x8] sm:$0xf]
  %v547 = vld [vmem:[%s4 + $0xc] sm:$0xf]
  %v548 = vld [vmem:[%s4 + $0x10] sm:$0xf]
  %v549 = vld [vmem:[%s4 + $0x14] sm:$0xf]
  %v550 = vld [vmem:[%s4 + $0x18] sm:$0xf]
  %v551 = vld [vmem:[%s4 + $0x1c] sm:$0xf]
  %v552 = vld [vmem:[%s4 + $0x20] sm:$0xf]
  %v553 = vld [vmem:[%s4 + $0x24] sm:$0xf]
  %v554 = vld [vmem:[%s4 + $0x28] sm:$0xf]
  %v555 = vld [vmem:[%s4 + $0x2c] sm:$0xf]
  %v556 = vld [vmem:[%s4 + $0x30] sm:$0xf]
  %v557 = vld [vmem:[%s4 + $0x34] sm:$0xf]
  %v558 = vld [vmem:[%s4 + $0x38] sm:$0xf]
  %v559 = vld [vmem:[%s4 + $0x3c] sm:$0xf]
  %v560 = vld [vmem:[%s5] sm:$0x1]
  %v562 = vlaneseq
  %v563 = vshrl.u32 %v562, 7
  %v564 = vsub.s32 0, %v563
  %v565 = vrot.slane %v560, %v564
  %v583 = vunpack.c.l.b16 %v544
  %v584 = vunpack.c.l.b16 %v545
  %v585 = vunpack.c.l.b16 %v546
  %v586 = vunpack.c.l.b16 %v547
  %v587 = vunpack.c.l.b16 %v548
  %v588 = vunpack.c.l.b16 %v549
  %v589 = vunpack.c.l.b16 %v550
  %v590 = vunpack.c.l.b16 %v551
  %v591 = vunpack.c.l.b16 %v552
  %v592 = vunpack.c.l.b16 %v553
  %v593 = vunpack.c.l.b16 %v554
  %v594 = vunpack.c.l.b16 %v555
  %v595 = vunpack.c.l.b16 %v556
  %v596 = vunpack.c.l.b16 %v557
  %v597 = vunpack.c.l.b16 %v558
  %v598 = vunpack.c.l.b16 %v559
  %v599 = vpack.c.b16 %v584, %v583
  %v600 = vpack.c.b16 %v586, %v585
  %v601 = vpack.c.b16 %v588, %v587
  %v602 = vpack.c.b16 %v590, %v589
  %v603 = vpack.c.b16 %v592, %v591
  %v604 = vpack.c.b16 %v594, %v593
  %v605 = vpack.c.b16 %v596, %v595
  %v606 = vpack.c.b16 %v598, %v597
  %615 = vmatprep.subr.bf16.mxu0 0
  %616 = vmatpush1.bf16.msra.mxu0 %v599
  %617 = vmatprep.subr.bf16.mxu0 0
  %618 = vmatpush1.bf16.msra.mxu0 %v600
  %619 = vmatprep.subr.bf16.mxu0 0
  %620 = vmatpush1.bf16.msra.mxu0 %v601
  %621 = vmatprep.subr.bf16.mxu0 0
  %622 = vmatpush1.bf16.msra.mxu0 %v602
  %623 = vmatprep.subr.bf16.mxu0 0
  %624 = vmatpush1.bf16.msra.mxu0 %v603
  %625 = vmatprep.subr.bf16.mxu0 0
  %626 = vmatpush1.bf16.msra.mxu0 %v604
  %627 = vmatprep.subr.bf16.mxu0 0
  %628 = vmatpush1.bf16.msra.mxu0 %v605
  %629 = vmatprep.subr.bf16.mxu0 0
  %630 = vmatpush1.bf16.msra.mxu0 %v606
  %631 = vmatprep.subr.bf16.mxu0 0
  %632 = vmatpush1.bf16.msra.mxu0 0
  %633 = vmatprep.subr.bf16.mxu0 0
  %634 = vmatpush1.bf16.msra.mxu0 0
  %635 = vmatprep.subr.bf16.mxu0 0
  %636 = vmatpush1.bf16.msra.mxu0 0
  %637 = vmatprep.subr.bf16.mxu0 0
  %638 = vmatpush1.bf16.msra.mxu0 0
  %639 = vmatprep.subr.bf16.mxu0 0
  %640 = vmatpush1.bf16.msra.mxu0 0
  %641 = vmatprep.subr.bf16.mxu0 0
  %642 = vmatpush1.bf16.msra.mxu0 0
  %643 = vmatprep.subr.bf16.mxu0 0
  %644 = vmatpush1.bf16.msra.mxu0 0
  %645 = vmatprep.subr.bf16.mxu0 0
  %646 = vmatpush1.bf16.msra.mxu0 0
  %647 = vmatprep.mubr.bf16.mxu0 0
  %648 = vmatmul.mubr.bf16.gmra.mrb[0].mxu0 %v536
  %v649 = vpop.f32.mrb[0].mxu0
  %v650 = vadd.f32 %v565, %v649
  %v651 = vpop.f32.mrb[0].mxu0
  %v652 = vpop.f32.mrb[0].mxu0
  %v653 = vadd.f32 %v565, %v652
  %v654 = vpop.f32.mrb[0].mxu0
  %655 = vmatprep.mubr.bf16.mxu0 0
  %656 = vmatmul.mubr.bf16.gmra.mrb[0].mxu0 %v537
  %v657 = vpop.f32.mrb[0].mxu0
  %v658 = vadd.f32 %v565, %v657
  %v659 = vpop.f32.mrb[0].mxu0
  %v660 = vpop.f32.mrb[0].mxu0
  %v661 = vadd.f32 %v565, %v660
  %v662 = vpop.f32.mrb[0].mxu0
  %663 = vmatprep.mubr.bf16.mxu0 0
  %664 = vmatmul.mubr.bf16.gmra.mrb[0].mxu0 %v538
  %v665 = vpop.f32.mrb[0].mxu0
  %v666 = vadd.f32 %v565, %v665
  %v667 = vpop.f32.mrb[0].mxu0
  %v668 = vpop.f32.mrb[0].mxu0
  %v669 = vadd.f32 %v565, %v668
  %v670 = vpop.f32.mrb[0].mxu0
  %671 = vmatprep.mubr.bf16.mxu0 0
  %672 = vmatmul.mubr.bf16.gmra.mrb[0].mxu0 %v539
  %v673 = vpop.f32.mrb[0].mxu0
  %v674 = vadd.f32 %v565, %v673
  %v675 = vpop.f32.mrb[0].mxu0
  %v676 = vpop.f32.mrb[0].mxu0
  %v677 = vadd.f32 %v565, %v676
  %v678 = vpop.f32.mrb[0].mxu0
  %679 = vmatprep.mubr.bf16.mxu0 0
  %680 = vmatmul.mubr.bf16.gmra.mrb[0].mxu0 %v540
  %v681 = vpop.f32.mrb[0].mxu0
  %v682 = vadd.f32 %v565, %v681
  %v683 = vpop.f32.mrb[0].mxu0
  %v684 = vpop.f32.mrb[0].mxu0
  %v685 = vadd.f32 %v565, %v684
  %v686 = vpop.f32.mrb[0].mxu0
  %687 = vmatprep.mubr.bf16.mxu0 0
  %688 = vmatmul.mubr.bf16.gmra.mrb[0].mxu0 %v541
  %v689 = vpop.f32.mrb[0].mxu0
  %v690 = vadd.f32 %v565, %v689
  %v691 = vpop.f32.mrb[0].mxu0
  %v692 = vpop.f32.mrb[0].mxu0
  %v693 = vadd.f32 %v565, %v692
  %v694 = vpop.f32.mrb[0].mxu0
  %695 = vmatprep.mubr.bf16.mxu0 0
  %696 = vmatmul.mubr.bf16.gmra.mrb[0].mxu0 %v542
  %v697 = vpop.f32.mrb[0].mxu0
  %v698 = vadd.f32 %v565, %v697
  %v699 = vpop.f32.mrb[0].mxu0
  %v700 = vpop.f32.mrb[0].mxu0
  %v701 = vadd.f32 %v565, %v700
  %v702 = vpop.f32.mrb[0].mxu0
  %703 = vmatprep.mubr.bf16.mxu0 0
  %704 = vmatmul.mubr.bf16.gmra.mrb[0].mxu0 %v543
  %v705 = vpop.f32.mrb[0].mxu0
  %v706 = vadd.f32 %v565, %v705
  %v707 = vpop.f32.mrb[0].mxu0
  %v708 = vpop.f32.mrb[0].mxu0
  %v709 = vadd.f32 %v565, %v708
  %v710 = vpop.f32.mrb[0].mxu0
  %711 = vdwg.mxu0
  %712 = vst [vmem:[%s10] sm:$0xff] %v312
  %713 = vst [vmem:[%s10 + $0x8] sm:$0xff] %v314
  %714 = vst [vmem:[%s10 + $0x10] sm:$0xff] %v316
  %715 = vst [vmem:[%s10 + $0x18] sm:$0xff] %v318
  %716 = vst [vmem:[%s10 + $0x20] sm:$0xff] %v320
  %717 = vst [vmem:[%s10 + $0x28] sm:$0xff] %v322
  %718 = vst [vmem:[%s10 + $0x30] sm:$0xff] %v324
  %719 = vst [vmem:[%s10 + $0x38] sm:$0xff] %v326
  %720 = vst [vmem:[%s10 + $0x40] sm:$0xff] %v328
  %721 = vst [vmem:[%s10 + $0x48] sm:$0xff] %v330
  %722 = vst [vmem:[%s10 + $0x50] sm:$0xff] %v332
  %723 = vst [vmem:[%s10 + $0x58] sm:$0xff] %v334
  %724 = vst [vmem:[%s10 + $0x60] sm:$0xff] %v336
  %725 = vst [vmem:[%s10 + $0x68] sm:$0xff] %v338
  %726 = vst [vmem:[%s10 + $0x70] sm:$0xff] %v340
  %727 = vst [vmem:[%s10 + $0x78] sm:$0xff] %v342
  %728 = vst [vmem:[%s11] sm:$0xff] %v650
  %729 = vst [vmem:[%s11 + $0x8] sm:$0xff] %v653
  %730 = vst [vmem:[%s11 + $0x10] sm:$0xff] %v658
  %731 = vst [vmem:[%s11 + $0x18] sm:$0xff] %v661
  %732 = vst [vmem:[%s11 + $0x20] sm:$0xff] %v666
  %733 = vst [vmem:[%s11 + $0x28] sm:$0xff] %v669
  %734 = vst [vmem:[%s11 + $0x30] sm:$0xff] %v674
  %735 = vst [vmem:[%s11 + $0x38] sm:$0xff] %v677
  %736 = vst [vmem:[%s11 + $0x40] sm:$0xff] %v682
  %737 = vst [vmem:[%s11 + $0x48] sm:$0xff] %v685
  %738 = vst [vmem:[%s11 + $0x50] sm:$0xff] %v690
  %739 = vst [vmem:[%s11 + $0x58] sm:$0xff] %v693
  %740 = vst [vmem:[%s11 + $0x60] sm:$0xff] %v698
  %741 = vst [vmem:[%s11 + $0x68] sm:$0xff] %v701
  %742 = vst [vmem:[%s11 + $0x70] sm:$0xff] %v706
  %743 = vst [vmem:[%s11 + $0x78] sm:$0xff] %v709
  %v744 = vpack.c.bf16 %v315, %v313
  %v745 = vpack.c.bf16 %v319, %v317
  %v746 = vpack.c.bf16 %v323, %v321
  %v747 = vpack.c.bf16 %v327, %v325
  %v748 = vpack.c.bf16 %v331, %v329
  %v749 = vpack.c.bf16 %v335, %v333
  %v750 = vpack.c.bf16 %v339, %v337
  %v751 = vpack.c.bf16 %v343, %v341
  %v752 = vld [vmem:[%s6] sm:$0xf]
  %v753 = vld [vmem:[%s6 + $0x4] sm:$0xf]
  %v754 = vld [vmem:[%s6 + $0x8] sm:$0xf]
  %v755 = vld [vmem:[%s6 + $0xc] sm:$0xf]
  %v756 = vld [vmem:[%s6 + $0x10] sm:$0xf]
  %v757 = vld [vmem:[%s6 + $0x14] sm:$0xf]
  %v758 = vld [vmem:[%s6 + $0x18] sm:$0xf]
  %v759 = vld [vmem:[%s6 + $0x1c] sm:$0xf]
  %v760 = vld [vmem:[%s6 + $0x20] sm:$0xf]
  %v761 = vld [vmem:[%s6 + $0x24] sm:$0xf]
  %v762 = vld [vmem:[%s6 + $0x28] sm:$0xf]
  %v763 = vld [vmem:[%s6 + $0x2c] sm:$0xf]
  %v764 = vld [vmem:[%s6 + $0x30] sm:$0xf]
  %v765 = vld [vmem:[%s6 + $0x34] sm:$0xf]
  %v766 = vld [vmem:[%s6 + $0x38] sm:$0xf]
  %v767 = vld [vmem:[%s6 + $0x3c] sm:$0xf]
  %v768 = vld [vmem:[%s7] sm:$0x1]
  %v770 = vlaneseq
  %v771 = vshrl.u32 %v770, 7
  %v772 = vsub.s32 0, %v771
  %v773 = vrot.slane %v768, %v772
  %v791 = vunpack.c.l.b16 %v752
  %v792 = vunpack.c.l.b16 %v753
  %v793 = vunpack.c.l.b16 %v754
  %v794 = vunpack.c.l.b16 %v755
  %v795 = vunpack.c.l.b16 %v756
  %v796 = vunpack.c.l.b16 %v757
  %v797 = vunpack.c.l.b16 %v758
  %v798 = vunpack.c.l.b16 %v759
  %v799 = vunpack.c.l.b16 %v760
  %v800 = vunpack.c.l.b16 %v761
  %v801 = vunpack.c.l.b16 %v762
  %v802 = vunpack.c.l.b16 %v763
  %v803 = vunpack.c.l.b16 %v764
  %v804 = vunpack.c.l.b16 %v765
  %v805 = vunpack.c.l.b16 %v766
  %v806 = vunpack.c.l.b16 %v767
  %v807 = vpack.c.b16 %v792, %v791
  %v808 = vpack.c.b16 %v794, %v793
  %v809 = vpack.c.b16 %v796, %v795
  %v810 = vpack.c.b16 %v798, %v797
  %v811 = vpack.c.b16 %v800, %v799
  %v812 = vpack.c.b16 %v802, %v801
  %v813 = vpack.c.b16 %v804, %v803
  %v814 = vpack.c.b16 %v806, %v805
  %823 = vmatprep.subr.bf16.mxu0 0
  %824 = vmatpush1.bf16.msra.mxu0 %v807
  %825 = vmatprep.subr.bf16.mxu0 0
  %826 = vmatpush1.bf16.msra.mxu0 %v808
  %827 = vmatprep.subr.bf16.mxu0 0
  %828 = vmatpush1.bf16.msra.mxu0 %v809
  %829 = vmatprep.subr.bf16.mxu0 0
  %830 = vmatpush1.bf16.msra.mxu0 %v810
  %831 = vmatprep.subr.bf16.mxu0 0
  %832 = vmatpush1.bf16.msra.mxu0 %v811
  %833 = vmatprep.subr.bf16.mxu0 0
  %834 = vmatpush1.bf16.msra.mxu0 %v812
  %835 = vmatprep.subr.bf16.mxu0 0
  %836 = vmatpush1.bf16.msra.mxu0 %v813
  %837 = vmatprep.subr.bf16.mxu0 0
  %838 = vmatpush1.bf16.msra.mxu0 %v814
  %839 = vmatprep.subr.bf16.mxu0 0
  %840 = vmatpush1.bf16.msra.mxu0 0
  %841 = vmatprep.subr.bf16.mxu0 0
  %842 = vmatpush1.bf16.msra.mxu0 0
  %843 = vmatprep.subr.bf16.mxu0 0
  %844 = vmatpush1.bf16.msra.mxu0 0
  %845 = vmatprep.subr.bf16.mxu0 0
  %846 = vmatpush1.bf16.msra.mxu0 0
  %847 = vmatprep.subr.bf16.mxu0 0
  %848 = vmatpush1.bf16.msra.mxu0 0
  %849 = vmatprep.subr.bf16.mxu0 0
  %850 = vmatpush1.bf16.msra.mxu0 0
  %851 = vmatprep.subr.bf16.mxu0 0
  %852 = vmatpush1.bf16.msra.mxu0 0
  %853 = vmatprep.subr.bf16.mxu0 0
  %854 = vmatpush1.bf16.msra.mxu0 0
  %855 = vmatprep.mubr.bf16.mxu0 0
  %856 = vmatmul.mubr.bf16.gmra.mrb[0].mxu0 %v744
  %v857 = vpop.f32.mrb[0].mxu0
  %v858 = vadd.f32 %v773, %v857
  %v859 = vpop.f32.mrb[0].mxu0
  %v860 = vpop.f32.mrb[0].mxu0
  %v861 = vadd.f32 %v773, %v860
  %v862 = vpop.f32.mrb[0].mxu0
  %863 = vmatprep.mubr.bf16.mxu0 0
  %864 = vmatmul.mubr.bf16.gmra.mrb[0].mxu0 %v745
  %v865 = vpop.f32.mrb[0].mxu0
  %v866 = vadd.f32 %v773, %v865
  %v867 = vpop.f32.mrb[0].mxu0
  %v868 = vpop.f32.mrb[0].mxu0
  %v869 = vadd.f32 %v773, %v868
  %v870 = vpop.f32.mrb[0].mxu0
  %871 = vmatprep.mubr.bf16.mxu0 0
  %872 = vmatmul.mubr.bf16.gmra.mrb[0].mxu0 %v746
  %v873 = vpop.f32.mrb[0].mxu0
  %v874 = vadd.f32 %v773, %v873
  %v875 = vpop.f32.mrb[0].mxu0
  %v876 = vpop.f32.mrb[0].mxu0
  %v877 = vadd.f32 %v773, %v876
  %v878 = vpop.f32.mrb[0].mxu0
  %879 = vmatprep.mubr.bf16.mxu0 0
  %880 = vmatmul.mubr.bf16.gmra.mrb[0].mxu0 %v747
  %v881 = vpop.f32.mrb[0].mxu0
  %v882 = vadd.f32 %v773, %v881
  %v883 = vpop.f32.mrb[0].mxu0
  %v884 = vpop.f32.mrb[0].mxu0
  %v885 = vadd.f32 %v773, %v884
  %v886 = vpop.f32.mrb[0].mxu0
  %887 = vmatprep.mubr.bf16.mxu0 0
  %888 = vmatmul.mubr.bf16.gmra.mrb[0].mxu0 %v748
  %v889 = vpop.f32.mrb[0].mxu0
  %v890 = vadd.f32 %v773, %v889
  %v891 = vpop.f32.mrb[0].mxu0
  %v892 = vpop.f32.mrb[0].mxu0
  %v893 = vadd.f32 %v773, %v892
  %v894 = vpop.f32.mrb[0].mxu0
  %895 = vmatprep.mubr.bf16.mxu0 0
  %896 = vmatmul.mubr.bf16.gmra.mrb[0].mxu0 %v749
  %v897 = vpop.f32.mrb[0].mxu0
  %v898 = vadd.f32 %v773, %v897
  %v899 = vpop.f32.mrb[0].mxu0
  %v900 = vpop.f32.mrb[0].mxu0
  %v901 = vadd.f32 %v773, %v900
  %v902 = vpop.f32.mrb[0].mxu0
  %903 = vmatprep.mubr.bf16.mxu0 0
  %904 = vmatmul.mubr.bf16.gmra.mrb[0].mxu0 %v750
  %v905 = vpop.f32.mrb[0].mxu0
  %v906 = vadd.f32 %v773, %v905
  %v907 = vpop.f32.mrb[0].mxu0
  %v908 = vpop.f32.mrb[0].mxu0
  %v909 = vadd.f32 %v773, %v908
  %v910 = vpop.f32.mrb[0].mxu0
  %911 = vmatprep.mubr.bf16.mxu0 0
  %912 = vmatmul.mubr.bf16.gmra.mrb[0].mxu0 %v751
  %v913 = vpop.f32.mrb[0].mxu0
  %v914 = vadd.f32 %v773, %v913
  %v915 = vpop.f32.mrb[0].mxu0
  %v916 = vpop.f32.mrb[0].mxu0
  %v917 = vadd.f32 %v773, %v916
  %v918 = vpop.f32.mrb[0].mxu0
  %919 = vdwg.mxu0
  %v920 = vmax.f32 %v858, 0.0
  %v921 = vmax.f32 %v861, 0.0
  %v922 = vmax.f32 %v866, 0.0
  %v923 = vmax.f32 %v869, 0.0
  %v924 = vmax.f32 %v874, 0.0
  %v925 = vmax.f32 %v877, 0.0
  %v926 = vmax.f32 %v882, 0.0
  %v927 = vmax.f32 %v885, 0.0
  %v928 = vmax.f32 %v890, 0.0
  %v929 = vmax.f32 %v893, 0.0
  %v930 = vmax.f32 %v898, 0.0
  %v931 = vmax.f32 %v901, 0.0
  %v932 = vmax.f32 %v906, 0.0
  %v933 = vmax.f32 %v909, 0.0
  %v934 = vmax.f32 %v914, 0.0
  %v935 = vmax.f32 %v917, 0.0
  %v936 = vpack.c.bf16 %v921, %v920
  %v937 = vpack.c.bf16 %v923, %v922
  %v938 = vpack.c.bf16 %v925, %v924
  %v939 = vpack.c.bf16 %v927, %v926
  %v940 = vpack.c.bf16 %v929, %v928
  %v941 = vpack.c.bf16 %v931, %v930
  %v942 = vpack.c.bf16 %v933, %v932
  %v943 = vpack.c.bf16 %v935, %v934
  %v944 = vld [vmem:[%s8] sm:$0xf]
  %v945 = vld [vmem:[%s8 + $0x4] sm:$0xf]
  %v946 = vld [vmem:[%s8 + $0x8] sm:$0xf]
  %v947 = vld [vmem:[%s8 + $0xc] sm:$0xf]
  %v948 = vld [vmem:[%s8 + $0x10] sm:$0xf]
  %v949 = vld [vmem:[%s8 + $0x14] sm:$0xf]
  %v950 = vld [vmem:[%s8 + $0x18] sm:$0xf]
  %v951 = vld [vmem:[%s8 + $0x1c] sm:$0xf]
  %v952 = vld [vmem:[%s8 + $0x20] sm:$0xf]
  %v953 = vld [vmem:[%s8 + $0x24] sm:$0xf]
  %v954 = vld [vmem:[%s8 + $0x28] sm:$0xf]
  %v955 = vld [vmem:[%s8 + $0x2c] sm:$0xf]
  %v956 = vld [vmem:[%s8 + $0x30] sm:$0xf]
  %v957 = vld [vmem:[%s8 + $0x34] sm:$0xf]
  %v958 = vld [vmem:[%s8 + $0x38] sm:$0xf]
  %v959 = vld [vmem:[%s8 + $0x3c] sm:$0xf]
  %v960 = vld [vmem:[%s9] sm:$0x1]
  %v962 = vlaneseq
  %v963 = vshrl.u32 %v962, 7
  %v964 = vsub.s32 0, %v963
  %v965 = vrot.slane %v960, %v964
  %v983 = vunpack.c.l.b16 %v944
  %v984 = vunpack.c.l.b16 %v945
  %v985 = vunpack.c.l.b16 %v946
  %v986 = vunpack.c.l.b16 %v947
  %v987 = vunpack.c.l.b16 %v948
  %v988 = vunpack.c.l.b16 %v949
  %v989 = vunpack.c.l.b16 %v950
  %v990 = vunpack.c.l.b16 %v951
  %v991 = vunpack.c.l.b16 %v952
  %v992 = vunpack.c.l.b16 %v953
  %v993 = vunpack.c.l.b16 %v954
  %v994 = vunpack.c.l.b16 %v955
  %v995 = vunpack.c.l.b16 %v956
  %v996 = vunpack.c.l.b16 %v957
  %v997 = vunpack.c.l.b16 %v958
  %v998 = vunpack.c.l.b16 %v959
  %v999 = vpack.c.b16 %v984, %v983
  %v1000 = vpack.c.b16 %v986, %v985
  %v1001 = vpack.c.b16 %v988, %v987
  %v1002 = vpack.c.b16 %v990, %v989
  %v1003 = vpack.c.b16 %v992, %v991
  %v1004 = vpack.c.b16 %v994, %v993
  %v1005 = vpack.c.b16 %v996, %v995
  %v1006 = vpack.c.b16 %v998, %v997
  %1015 = vmatprep.subr.bf16.mxu0 0
  %1016 = vmatpush1.bf16.msra.mxu0 %v999
  %1017 = vmatprep.subr.bf16.mxu0 0
  %1018 = vmatpush1.bf16.msra.mxu0 %v1000
  %1019 = vmatprep.subr.bf16.mxu0 0
  %1020 = vmatpush1.bf16.msra.mxu0 %v1001
  %1021 = vmatprep.subr.bf16.mxu0 0
  %1022 = vmatpush1.bf16.msra.mxu0 %v1002
  %1023 = vmatprep.subr.bf16.mxu0 0
  %1024 = vmatpush1.bf16.msra.mxu0 %v1003
  %1025 = vmatprep.subr.bf16.mxu0 0
  %1026 = vmatpush1.bf16.msra.mxu0 %v1004
  %1027 = vmatprep.subr.bf16.mxu0 0
  %1028 = vmatpush1.bf16.msra.mxu0 %v1005
  %1029 = vmatprep.subr.bf16.mxu0 0
  %1030 = vmatpush1.bf16.msra.mxu0 %v1006
  %1031 = vmatprep.subr.bf16.mxu0 0
  %1032 = vmatpush1.bf16.msra.mxu0 0
  %1033 = vmatprep.subr.bf16.mxu0 0
  %1034 = vmatpush1.bf16.msra.mxu0 0
  %1035 = vmatprep.subr.bf16.mxu0 0
  %1036 = vmatpush1.bf16.msra.mxu0 0
  %1037 = vmatprep.subr.bf16.mxu0 0
  %1038 = vmatpush1.bf16.msra.mxu0 0
  %1039 = vmatprep.subr.bf16.mxu0 0
  %1040 = vmatpush1.bf16.msra.mxu0 0
  %1041 = vmatprep.subr.bf16.mxu0 0
  %1042 = vmatpush1.bf16.msra.mxu0 0
  %1043 = vmatprep.subr.bf16.mxu0 0
  %1044 = vmatpush1.bf16.msra.mxu0 0
  %1045 = vmatprep.subr.bf16.mxu0 0
  %1046 = vmatpush1.bf16.msra.mxu0 0
  %1047 = vmatprep.mubr.bf16.mxu0 0
  %1048 = vmatmul.mubr.bf16.gmra.mrb[0].mxu0 %v936
  %v1049 = vpop.f32.mrb[0].mxu0
  %v1050 = vadd.f32 %v965, %v1049
  %v1051 = vpop.f32.mrb[0].mxu0
  %v1052 = vpop.f32.mrb[0].mxu0
  %v1053 = vadd.f32 %v965, %v1052
  %v1054 = vpop.f32.mrb[0].mxu0
  %1055 = vmatprep.mubr.bf16.mxu0 0
  %1056 = vmatmul.mubr.bf16.gmra.mrb[0].mxu0 %v937
  %v1057 = vpop.f32.mrb[0].mxu0
  %v1058 = vadd.f32 %v965, %v1057
  %v1059 = vpop.f32.mrb[0].mxu0
  %v1060 = vpop.f32.mrb[0].mxu0
  %v1061 = vadd.f32 %v965, %v1060
  %v1062 = vpop.f32.mrb[0].mxu0
  %1063 = vmatprep.mubr.bf16.mxu0 0
  %1064 = vmatmul.mubr.bf16.gmra.mrb[0].mxu0 %v938
  %v1065 = vpop.f32.mrb[0].mxu0
  %v1066 = vadd.f32 %v965, %v1065
  %v1067 = vpop.f32.mrb[0].mxu0
  %v1068 = vpop.f32.mrb[0].mxu0
  %v1069 = vadd.f32 %v965, %v1068
  %v1070 = vpop.f32.mrb[0].mxu0
  %1071 = vmatprep.mubr.bf16.mxu0 0
  %1072 = vmatmul.mubr.bf16.gmra.mrb[0].mxu0 %v939
  %v1073 = vpop.f32.mrb[0].mxu0
  %v1074 = vadd.f32 %v965, %v1073
  %v1075 = vpop.f32.mrb[0].mxu0
  %v1076 = vpop.f32.mrb[0].mxu0
  %v1077 = vadd.f32 %v965, %v1076
  %v1078 = vpop.f32.mrb[0].mxu0
  %1079 = vmatprep.mubr.bf16.mxu0 0
  %1080 = vmatmul.mubr.bf16.gmra.mrb[0].mxu0 %v940
  %v1081 = vpop.f32.mrb[0].mxu0
  %v1082 = vadd.f32 %v965, %v1081
  %v1083 = vpop.f32.mrb[0].mxu0
  %v1084 = vpop.f32.mrb[0].mxu0
  %v1085 = vadd.f32 %v965, %v1084
  %v1086 = vpop.f32.mrb[0].mxu0
  %1087 = vmatprep.mubr.bf16.mxu0 0
  %1088 = vmatmul.mubr.bf16.gmra.mrb[0].mxu0 %v941
  %v1089 = vpop.f32.mrb[0].mxu0
  %v1090 = vadd.f32 %v965, %v1089
  %v1091 = vpop.f32.mrb[0].mxu0
  %v1092 = vpop.f32.mrb[0].mxu0
  %v1093 = vadd.f32 %v965, %v1092
  %v1094 = vpop.f32.mrb[0].mxu0
  %1095 = vmatprep.mubr.bf16.mxu0 0
  %1096 = vmatmul.mubr.bf16.gmra.mrb[0].mxu0 %v942
  %v1097 = vpop.f32.mrb[0].mxu0
  %v1098 = vadd.f32 %v965, %v1097
  %v1099 = vpop.f32.mrb[0].mxu0
  %v1100 = vpop.f32.mrb[0].mxu0
  %v1101 = vadd.f32 %v965, %v1100
  %v1102 = vpop.f32.mrb[0].mxu0
  %1103 = vmatprep.mubr.bf16.mxu0 0
  %1104 = vmatmul.mubr.bf16.gmra.mrb[0].mxu0 %v943
  %v1105 = vpop.f32.mrb[0].mxu0
  %v1106 = vadd.f32 %v965, %v1105
  %v1107 = vpop.f32.mrb[0].mxu0
  %v1108 = vpop.f32.mrb[0].mxu0
  %v1109 = vadd.f32 %v965, %v1108
  %v1110 = vpop.f32.mrb[0].mxu0
  %1111 = vdwg.mxu0
  %1112 = vst [vmem:[%s12] sm:$0xff] %v1050
  %1113 = vst [vmem:[%s12 + $0x8] sm:$0xff] %v1053
  %1114 = vst [vmem:[%s12 + $0x10] sm:$0xff] %v1058
  %1115 = vst [vmem:[%s12 + $0x18] sm:$0xff] %v1061
  %1116 = vst [vmem:[%s12 + $0x20] sm:$0xff] %v1066
  %1117 = vst [vmem:[%s12 + $0x28] sm:$0xff] %v1069
  %1118 = vst [vmem:[%s12 + $0x30] sm:$0xff] %v1074
  %1119 = vst [vmem:[%s12 + $0x38] sm:$0xff] %v1077
  %1120 = vst [vmem:[%s12 + $0x40] sm:$0xff] %v1082
  %1121 = vst [vmem:[%s12 + $0x48] sm:$0xff] %v1085
  %1122 = vst [vmem:[%s12 + $0x50] sm:$0xff] %v1090
  %1123 = vst [vmem:[%s12 + $0x58] sm:$0xff] %v1093
  %1124 = vst [vmem:[%s12 + $0x60] sm:$0xff] %v1098
  %1125 = vst [vmem:[%s12 + $0x68] sm:$0xff] %v1101
  %1126 = vst [vmem:[%s12 + $0x70] sm:$0xff] %v1106
  %1127 = vst [vmem:[%s12 + $0x78] sm:$0xff] %v1109
  // Predicated region
  $region42: #{s3cl_forward.9} parent=0 // pred_check
    _
  $region43: #{s3cl_forward.9} parent=0 // pred_check_branch
    %1129 = sbr.rel (0) target = $region45
  $region44: #{s3cl_forward.9} parent=0 // pred_region
    _
  $region45: #{s3cl_forward.9} parent=0 // pred_fallthru
    _
  // Predicated region
  $region46: #{s3cl_forward.9} parent=0 // pred_check
    _
  $region47: #{s3cl_forward.9} parent=0 // pred_check_branch
    %1131 = sbr.rel (0) target = $region49
  $region48: #{s3cl_forward.9} parent=0 // pred_region
    _
  $region49: #{s3cl_forward.9} parent=0 // pred_fallthru
    _
  // Predicated region
  $region50: #{s3cl_forward.9} parent=0 // pred_check
    _
  $region51: #{s3cl_forward.9} parent=0 // pred_check_branch
    %1133 = sbr.rel (0) target = $region53
  $region52: #{s3cl_forward.9} parent=0 // pred_region
    _
  $region53: #{s3cl_forward.9} parent=0 // pred_fallthru
    _
  // Predicated region
  $region54: #{s3cl_forward.9} parent=0 // pred_check
    _
  $region55: #{s3cl_forward.9} parent=0 // pred_check_branch
    %1135 = sbr.rel (0) target = $region57
  $region56: #{s3cl_forward.9} parent=0 // pred_region
    _
  $region57: #{s3cl_forward.9} parent=0 // pred_fallthru
    _
  // Predicated region
  $region58: #{s3cl_forward.9} parent=0 // pred_check
    _
  $region59: #{s3cl_forward.9} parent=0 // pred_check_branch
    %1137 = sbr.rel (0) target = $region61
  $region60: #{s3cl_forward.9} parent=0 // pred_region
    _
  $region61: #{s3cl_forward.9} parent=0 // pred_fallthru
    _
  // Predicated region
  $region62: #{s3cl_forward.9} parent=0 // pred_check
    _
  $region63: #{s3cl_forward.9} parent=0 // pred_check_branch
    %1139 = sbr.rel (0) target = $region65
  $region64: #{s3cl_forward.9} parent=0 // pred_region
    _
  $region65: #{s3cl_forward.9} parent=0 // pred_fallthru
    _

</llo_original>
